<compile_context>
chip_gen: v5e
topology: v5e:2x2
jax: 0.10.0
libtpu: 0.0.40
codegen_flags: <defaults>
</compile_context>

<pallas_src>
import jax
import jax.numpy as jnp
import numpy as np
from jax.experimental import pallas as pl
from jax.experimental.pallas import tpu as pltpu


# PyTorch gate order in the stacked weights is (i, f, g, o).
# We repack to (i, f, o, g) so the three sigmoid gates are lane-contiguous.
GATE_ORDER = (0, 1, 3, 2)
BPAD = 8  # batch padded to one full sublane tile


def lstm_kernel(x_ref, wih_ref, whh_ref, b_ref, wlin_ref, blin_ref,
                out_ref, proj_a_ref, proj_b_ref):
    """Multi-layer LSTM + final Linear, entirely in-kernel (no grid).

    x_ref:    (B, T, Din)   f32 raw batch-first input (no wrapper relayout)
    wih_ref:  (L, H, 4H)    bf16 fused-gate input weights (layer 0 zero-padded
                            from Din to H rows), gate order (i, f, o, g)
    whh_ref:  (L, H, 4H)    bf16 fused-gate recurrent weights
    b_ref:    (L, 1, 4H)    f32 combined biases (b_ih + b_hh)
    wlin_ref: (H, out_dim)  f32 final linear weight (transposed)
    blin_ref: (1, out_dim)  f32 final linear bias
    out_ref:  (B, out_dim)
    proj_a/b: (T*BPAD, 4H)  f32 ping-pong scratches holding each layer's input
                            projection (gates before the h @ Whh term)
    """
    B, T, Din = x_ref.shape
    L, H, G = whh_ref.shape          # G = 4H
    f32 = jnp.float32
    bf16 = jnp.bfloat16

    # ---- layer-0 input projection (off the recurrent chain) ----------------
    # Zero the scratch once so the padded sublanes (rows B..BPAD-1) are exact
    # zeros; the padded rows of h/c then never produce non-finite values and
    # never mix into the real rows (all ops are row-wise).
    proj_a_ref[...] = jnp.zeros((T * BPAD, G), f32)
    w0 = wih_ref[0][:Din, :]          # (Din, 4H) bf16 (drop the zero padding)
    b0 = b_ref[0]                     # (1, 4H)   f32
    for t in range(T):
        xt = x_ref[:, t, :].astype(bf16)                        # (B, Din)
        proj_a_ref[pl.ds(t * BPAD, B), :] = (
            jnp.dot(xt, w0, preferred_element_type=f32) + b0)

    proj_refs = (proj_a_ref, proj_b_ref)

    # ---- stacked recurrence; next layer's projection fused into each step --
    h = jnp.zeros((BPAD, H), f32)
    for l in range(L):
        cur = proj_refs[l % 2]
        last = (l == L - 1)
        whh_l = whh_ref[l]                                      # (H, 4H) bf16
        if not last:
            nxt = proj_refs[(l + 1) % 2]
            wih_n = wih_ref[l + 1]                              # (H, 4H) bf16
            b_n = b_ref[l + 1]                                  # (1, 4H) f32

        h = jnp.zeros((BPAD, H), f32)
        c = jnp.zeros((BPAD, H), f32)
        hb = h.astype(bf16)
        for t in range(T):                                      # static unroll
            row = t * BPAD
            g_in = cur[pl.ds(row, BPAD), :]                     # full (8,128) tile
            if t == 0:
                gates = g_in                                    # h == 0
            else:
                gates = g_in + jnp.dot(hb, whh_l,
                                       preferred_element_type=f32)
            # Vreg-dense activations: one sigmoid + one tanh over all 4H
            # lanes; gate extraction afterwards (alignment goes to the XLU).
            sig = jax.nn.sigmoid(gates)
            tg = jnp.tanh(gates)
            i_g = sig[:, 0 * H:1 * H]
            f_g = sig[:, 1 * H:2 * H]
            o_g = sig[:, 2 * H:3 * H]
            g_g = tg[:, 3 * H:4 * H]
            c = i_g * g_g if t == 0 else f_g * c + i_g * g_g
            h = o_g * jnp.tanh(c)
            hb = h.astype(bf16)
            if not last:
                # Fused next-layer input projection: hidden under this layer's
                # recurrence instead of a serial inter-layer projection pass.
                nxt[pl.ds(row, BPAD), :] = (
                    jnp.dot(hb, wih_n, preferred_element_type=f32) + b_n)

    # ---- final Linear on the last timestep's hidden state ------------------
    res = jnp.dot(h, wlin_ref[...], preferred_element_type=f32) + blin_ref[...]
    out_ref[...] = res[:B, :]


def lstm_model_forward(x, packed):
    """x: (B, T, in_dim) batch-first (PyTorch convention). Returns (B, out_dim).

    (The PyTorch forward's `future_dim` argument is unused by the computation.)
    """
    B, T, Din = x.shape
    L, H, G = packed["whh"].shape
    out_dim = packed["wlin"].shape[-1]
    assert B <= BPAD, "kernel assumes batch <= 8 (one sublane tile)"

    vmem = pl.BlockSpec(memory_space=pltpu.MemorySpace.VMEM)
    return pl.pallas_call(
        lstm_kernel,
        out_shape=jax.ShapeDtypeStruct((B, out_dim), jnp.float32),
        in_specs=[vmem] * 6,
        out_specs=vmem,
        scratch_shapes=[pltpu.VMEM((T * BPAD, G), jnp.float32),
                        pltpu.VMEM((T * BPAD, G), jnp.float32)],
    )(x.astype(jnp.float32), packed["wih"], packed["whh"], packed["b"],
      packed["wlin"], packed["blin"])


def init_params(key, in_dim, hidden_dim, out_dim, num_layers):
    """Deterministic init mirroring PyTorch's uniform(-1/sqrt(H), 1/sqrt(H))."""
    H = hidden_dim
    bound = 1.0 / np.sqrt(H)
    keys = jax.random.split(key, num_layers * 4 + 2)
    idx = 0
    layers = []
    for l in range(num_layers):
        din = in_dim if l == 0 else H
        W_ih = jax.random.uniform(keys[idx], (4 * H, din), minval=-bound, maxval=bound); idx += 1
        W_hh = jax.random.uniform(keys[idx], (4 * H, H), minval=-bound, maxval=bound); idx += 1
        b_ih = jax.random.uniform(keys[idx], (4 * H,), minval=-bound, maxval=bound); idx += 1
        b_hh = jax.random.uniform(keys[idx], (4 * H,), minval=-bound, maxval=bound); idx += 1
        layers.append((W_ih, W_hh, b_ih, b_hh))
    W_lin = jax.random.uniform(keys[idx], (out_dim, H), minval=-bound, maxval=bound); idx += 1
    b_lin = jax.random.uniform(keys[idx], (out_dim,), minval=-bound, maxval=bound)
    return layers, W_lin, b_lin


def pack_params(layers, W_lin, b_lin, H):
    """Repack PyTorch-shaped params into fused-gate, right-multiply, stacked layout.

    PyTorch: W_ih (4H, D) rows blocked as (i, f, g, o); we produce (D, 4H) with
    columns blocked as (i, f, o, g). Layer 0's input weight is zero-padded from
    in_dim to H rows so all layers stack into one (L, H, 4H) bf16 array.
    """
    order = jnp.array(GATE_ORDER)

    def fuse_w(W):  # (4H, D) -> (D, 4H)
        Wg = W.reshape(4, H, -1)[order]            # (4, H, D), gate-reordered
        D = Wg.shape[-1]
        return jnp.transpose(Wg, (2, 0, 1)).reshape(D, 4 * H)

    def fuse_b(b_ih, b_hh):  # -> (1, 4H)
        return (b_ih + b_hh).reshape(4, H)[order].reshape(1, 4 * H)

    wih_list = []
    for (W_ih, _, _, _) in layers:
        w = fuse_w(W_ih)                           # (D_l, 4H)
        assert w.shape[0] <= H, "in_dim > hidden_dim not supported by packing"
        if w.shape[0] < H:                         # layer 0: pad Din -> H rows
            w = jnp.pad(w, ((0, H - w.shape[0]), (0, 0)))
        wih_list.append(w)
    wih = jnp.stack(wih_list).astype(jnp.bfloat16)                  # (L, H, 4H)
    whh = jnp.stack([fuse_w(l[1]) for l in layers]).astype(jnp.bfloat16)
    b = jnp.stack([fuse_b(l[2], l[3]) for l in layers]).astype(jnp.float32)
    return dict(wih=wih, whh=whh, b=b,
                wlin=W_lin.T.astype(jnp.float32),
                blin=b_lin.reshape(1, -1).astype(jnp.float32))


def lstm_ref(x, layers, W_lin, b_lin, H):
    """Pure-JAX reference matching torch.nn.LSTM(batch_first) + Linear on last step."""
    B, T, _ = x.shape
    inp = x
    for (W_ih, W_hh, b_ih, b_hh) in layers:
        h = jnp.zeros((B, H), jnp.float32)
        c = jnp.zeros((B, H), jnp.float32)
        outs = []
        for t in range(T):
            gates = inp[:, t] @ W_ih.T + h @ W_hh.T + b_ih + b_hh
            i, f, g, o = jnp.split(gates, 4, axis=-1)
            i = jax.nn.sigmoid(i); f = jax.nn.sigmoid(f)
            g = jnp.tanh(g); o = jax.nn.sigmoid(o)
            c = f * c + i * g
            h = o * jnp.tanh(c)
            outs.append(h)
        inp = jnp.stack(outs, axis=1)
    return inp[:, -1] @ W_lin.T + b_lin


if __name__ == "__main__":
    B, T = 2, 8
    in_dim, hidden_dim, out_dim, num_layers = 4, 32, 8, 3

    root = jax.random.PRNGKey(0)
    k_x, k_p = jax.random.split(root)
    x = jax.random.normal(k_x, (B, T, in_dim), dtype=jnp.float32)

    layers, W_lin, b_lin = init_params(k_p, in_dim, hidden_dim, out_dim, num_layers)
    packed = pack_params(layers, W_lin, b_lin, hidden_dim)

    out = lstm_model_forward(x, packed)
    out = jax.block_until_ready(out)

    ref = lstm_ref(x, layers, W_lin, b_lin, hidden_dim)
    # bf16 MXU operands (f32 accumulation) -> looser tolerance than the old
    # all-f32 version's 1e-4.
    np.testing.assert_allclose(np.asarray(out), np.asarray(ref), rtol=2e-2, atol=2e-2)
    print("KERNEL_OK")
</pallas_src>

<mosaic_0001>
module attributes {stable_mosaic.version = 11 : i64} {
  func.func @lstm_kernel(%arg0: memref<2x8x4xf32, #tpu.memory_space<vmem>>, %arg1: memref<3x32x128xbf16, #tpu.memory_space<vmem>>, %arg2: memref<3x32x128xbf16, #tpu.memory_space<vmem>>, %arg3: memref<3x1x128xf32, #tpu.memory_space<vmem>>, %arg4: memref<32x8xf32, #tpu.memory_space<vmem>>, %arg5: memref<1x8xf32, #tpu.memory_space<vmem>>, %arg6: memref<2x8xf32, #tpu.memory_space<vmem>>, %arg7: memref<64x128xf32, #tpu.memory_space<vmem>>, %arg8: memref<64x128xf32, #tpu.memory_space<vmem>>) attributes {dimension_semantics = [], scalar_prefetch = 0 : i64, scratch_operands = 2 : i64, tpu.core_type = #tpu.core_type<tc>} {
    %cst = arith.constant 0.000000e+00 : f32
    %0 = vector.broadcast %cst : f32 to vector<64x128xf32>
    %c0 = arith.constant 0 : index
    %c0_0 = arith.constant 0 : index
    %1 = vector.load %arg7[%c0, %c0_0] : memref<64x128xf32, #tpu.memory_space<vmem>>, vector<64x128xf32>
    tpu.vector_store %arg7[%c0, %c0_0], %0 {strides = array<i32>} : memref<64x128xf32, #tpu.memory_space<vmem>>, vector<64x128xf32>,
    %c0_1 = arith.constant 0 : index
    %c0_2 = arith.constant 0 : index
    %c0_3 = arith.constant 0 : index
    %2 = vector.load %arg1[%c0_1, %c0_2, %c0_3] : memref<3x32x128xbf16, #tpu.memory_space<vmem>>, vector<1x32x128xbf16>
    %3 = vector.shape_cast %2 : vector<1x32x128xbf16> to vector<32x128xbf16>
    %4 = vector.extract_strided_slice %3 {offsets = [0, 0], sizes = [4, 128], strides = [1, 1]} : vector<32x128xbf16> to vector<4x128xbf16>
    %c0_4 = arith.constant 0 : index
    %c0_5 = arith.constant 0 : index
    %c0_6 = arith.constant 0 : index
    %5 = vector.load %arg3[%c0_4, %c0_5, %c0_6] : memref<3x1x128xf32, #tpu.memory_space<vmem>>, vector<1x1x128xf32>
    %6 = vector.shape_cast %5 : vector<1x1x128xf32> to vector<1x128xf32>
    %c0_7 = arith.constant 0 : index
    %c0_8 = arith.constant 0 : index
    %c0_9 = arith.constant 0 : index
    %7 = vector.load %arg0[%c0_7, %c0_8, %c0_9] : memref<2x8x4xf32, #tpu.memory_space<vmem>>, vector<2x1x4xf32>
    %8 = vector.shape_cast %7 : vector<2x1x4xf32> to vector<2x4xf32>
    %9 = arith.truncf %8 : vector<2x4xf32> to vector<2x4xbf16>
    %cst_10 = arith.constant dense<0.000000e+00> : vector<2x128xf32>
    %10 = tpu.matmul %9, %4, %cst_10 {dimension_numbers = #tpu.dot_dimension_numbers<[1], [0], [0], [1], [0, 0, 1, 1], [], []>} : vector<2x4xbf16>, vector<4x128xbf16>, vector<2x128xf32> -> vector<2x128xf32>
    %11 = vector.broadcast %6 : vector<1x128xf32> to vector<2x128xf32>
    %12 = arith.addf %10, %11 : vector<2x128xf32>
    %c0_11 = arith.constant 0 : index
    %c0_12 = arith.constant 0 : index
    %13 = vector.load %arg7[%c0_11, %c0_12] : memref<64x128xf32, #tpu.memory_space<vmem>>, vector<2x128xf32>
    tpu.vector_store %arg7[%c0_11, %c0_12], %12 {strides = array<i32>} : memref<64x128xf32, #tpu.memory_space<vmem>>, vector<2x128xf32>,
    %c0_13 = arith.constant 0 : index
    %c1 = arith.constant 1 : index
    %c0_14 = arith.constant 0 : index
    %14 = vector.load %arg0[%c0_13, %c1, %c0_14] : memref<2x8x4xf32, #tpu.memory_space<vmem>>, vector<2x1x4xf32>
    %15 = vector.shape_cast %14 : vector<2x1x4xf32> to vector<2x4xf32>
    %16 = arith.truncf %15 : vector<2x4xf32> to vector<2x4xbf16>
    %cst_15 = arith.constant dense<0.000000e+00> : vector<2x128xf32>
    %17 = tpu.matmul %16, %4, %cst_15 {dimension_numbers = #tpu.dot_dimension_numbers<[1], [0], [0], [1], [0, 0, 1, 1], [], []>} : vector<2x4xbf16>, vector<4x128xbf16>, vector<2x128xf32> -> vector<2x128xf32>
    %18 = vector.broadcast %6 : vector<1x128xf32> to vector<2x128xf32>
    %19 = arith.addf %17, %18 : vector<2x128xf32>
    %c8 = arith.constant 8 : index
    %c0_16 = arith.constant 0 : index
    %20 = vector.load %arg7[%c8, %c0_16] : memref<64x128xf32, #tpu.memory_space<vmem>>, vector<2x128xf32>
    tpu.vector_store %arg7[%c8, %c0_16], %19 {strides = array<i32>} : memref<64x128xf32, #tpu.memory_space<vmem>>, vector<2x128xf32>,
    %c0_17 = arith.constant 0 : index
    %c2 = arith.constant 2 : index
    %c0_18 = arith.constant 0 : index
    %21 = vector.load %arg0[%c0_17, %c2, %c0_18] : memref<2x8x4xf32, #tpu.memory_space<vmem>>, vector<2x1x4xf32>
    %22 = vector.shape_cast %21 : vector<2x1x4xf32> to vector<2x4xf32>
    %23 = arith.truncf %22 : vector<2x4xf32> to vector<2x4xbf16>
    %cst_19 = arith.constant dense<0.000000e+00> : vector<2x128xf32>
    %24 = tpu.matmul %23, %4, %cst_19 {dimension_numbers = #tpu.dot_dimension_numbers<[1], [0], [0], [1], [0, 0, 1, 1], [], []>} : vector<2x4xbf16>, vector<4x128xbf16>, vector<2x128xf32> -> vector<2x128xf32>
    %25 = vector.broadcast %6 : vector<1x128xf32> to vector<2x128xf32>
    %26 = arith.addf %24, %25 : vector<2x128xf32>
    %c16 = arith.constant 16 : index
    %c0_20 = arith.constant 0 : index
    %27 = vector.load %arg7[%c16, %c0_20] : memref<64x128xf32, #tpu.memory_space<vmem>>, vector<2x128xf32>
    tpu.vector_store %arg7[%c16, %c0_20], %26 {strides = array<i32>} : memref<64x128xf32, #tpu.memory_space<vmem>>, vector<2x128xf32>,
    %c0_21 = arith.constant 0 : index
    %c3 = arith.constant 3 : index
    %c0_22 = arith.constant 0 : index
    %28 = vector.load %arg0[%c0_21, %c3, %c0_22] : memref<2x8x4xf32, #tpu.memory_space<vmem>>, vector<2x1x4xf32>
    %29 = vector.shape_cast %28 : vector<2x1x4xf32> to vector<2x4xf32>
    %30 = arith.truncf %29 : vector<2x4xf32> to vector<2x4xbf16>
    %cst_23 = arith.constant dense<0.000000e+00> : vector<2x128xf32>
    %31 = tpu.matmul %30, %4, %cst_23 {dimension_numbers = #tpu.dot_dimension_numbers<[1], [0], [0], [1], [0, 0, 1, 1], [], []>} : vector<2x4xbf16>, vector<4x128xbf16>, vector<2x128xf32> -> vector<2x128xf32>
    %32 = vector.broadcast %6 : vector<1x128xf32> to vector<2x128xf32>
    %33 = arith.addf %31, %32 : vector<2x128xf32>
    %c24 = arith.constant 24 : index
    %c0_24 = arith.constant 0 : index
    %34 = vector.load %arg7[%c24, %c0_24] : memref<64x128xf32, #tpu.memory_space<vmem>>, vector<2x128xf32>
    tpu.vector_store %arg7[%c24, %c0_24], %33 {strides = array<i32>} : memref<64x128xf32, #tpu.memory_space<vmem>>, vector<2x128xf32>,
    %c0_25 = arith.constant 0 : index
    %c4 = arith.constant 4 : index
    %c0_26 = arith.constant 0 : index
    %35 = vector.load %arg0[%c0_25, %c4, %c0_26] : memref<2x8x4xf32, #tpu.memory_space<vmem>>, vector<2x1x4xf32>
    %36 = vector.shape_cast %35 : vector<2x1x4xf32> to vector<2x4xf32>
    %37 = arith.truncf %36 : vector<2x4xf32> to vector<2x4xbf16>
    %cst_27 = arith.constant dense<0.000000e+00> : vector<2x128xf32>
    %38 = tpu.matmul %37, %4, %cst_27 {dimension_numbers = #tpu.dot_dimension_numbers<[1], [0], [0], [1], [0, 0, 1, 1], [], []>} : vector<2x4xbf16>, vector<4x128xbf16>, vector<2x128xf32> -> vector<2x128xf32>
    %39 = vector.broadcast %6 : vector<1x128xf32> to vector<2x128xf32>
    %40 = arith.addf %38, %39 : vector<2x128xf32>
    %c32 = arith.constant 32 : index
    %c0_28 = arith.constant 0 : index
    %41 = vector.load %arg7[%c32, %c0_28] : memref<64x128xf32, #tpu.memory_space<vmem>>, vector<2x128xf32>
    tpu.vector_store %arg7[%c32, %c0_28], %40 {strides = array<i32>} : memref<64x128xf32, #tpu.memory_space<vmem>>, vector<2x128xf32>,
    %c0_29 = arith.constant 0 : index
    %c5 = arith.constant 5 : index
    %c0_30 = arith.constant 0 : index
    %42 = vector.load %arg0[%c0_29, %c5, %c0_30] : memref<2x8x4xf32, #tpu.memory_space<vmem>>, vector<2x1x4xf32>
    %43 = vector.shape_cast %42 : vector<2x1x4xf32> to vector<2x4xf32>
    %44 = arith.truncf %43 : vector<2x4xf32> to vector<2x4xbf16>
    %cst_31 = arith.constant dense<0.000000e+00> : vector<2x128xf32>
    %45 = tpu.matmul %44, %4, %cst_31 {dimension_numbers = #tpu.dot_dimension_numbers<[1], [0], [0], [1], [0, 0, 1, 1], [], []>} : vector<2x4xbf16>, vector<4x128xbf16>, vector<2x128xf32> -> vector<2x128xf32>
    %46 = vector.broadcast %6 : vector<1x128xf32> to vector<2x128xf32>
    %47 = arith.addf %45, %46 : vector<2x128xf32>
    %c40 = arith.constant 40 : index
    %c0_32 = arith.constant 0 : index
    %48 = vector.load %arg7[%c40, %c0_32] : memref<64x128xf32, #tpu.memory_space<vmem>>, vector<2x128xf32>
    tpu.vector_store %arg7[%c40, %c0_32], %47 {strides = array<i32>} : memref<64x128xf32, #tpu.memory_space<vmem>>, vector<2x128xf32>,
    %c0_33 = arith.constant 0 : index
    %c6 = arith.constant 6 : index
    %c0_34 = arith.constant 0 : index
    %49 = vector.load %arg0[%c0_33, %c6, %c0_34] : memref<2x8x4xf32, #tpu.memory_space<vmem>>, vector<2x1x4xf32>
    %50 = vector.shape_cast %49 : vector<2x1x4xf32> to vector<2x4xf32>
    %51 = arith.truncf %50 : vector<2x4xf32> to vector<2x4xbf16>
    %cst_35 = arith.constant dense<0.000000e+00> : vector<2x128xf32>
    %52 = tpu.matmul %51, %4, %cst_35 {dimension_numbers = #tpu.dot_dimension_numbers<[1], [0], [0], [1], [0, 0, 1, 1], [], []>} : vector<2x4xbf16>, vector<4x128xbf16>, vector<2x128xf32> -> vector<2x128xf32>
    %53 = vector.broadcast %6 : vector<1x128xf32> to vector<2x128xf32>
    %54 = arith.addf %52, %53 : vector<2x128xf32>
    %c48 = arith.constant 48 : index
    %c0_36 = arith.constant 0 : index
    %55 = vector.load %arg7[%c48, %c0_36] : memref<64x128xf32, #tpu.memory_space<vmem>>, vector<2x128xf32>
    tpu.vector_store %arg7[%c48, %c0_36], %54 {strides = array<i32>} : memref<64x128xf32, #tpu.memory_space<vmem>>, vector<2x128xf32>,
    %c0_37 = arith.constant 0 : index
    %c7 = arith.constant 7 : index
    %c0_38 = arith.constant 0 : index
    %56 = vector.load %arg0[%c0_37, %c7, %c0_38] : memref<2x8x4xf32, #tpu.memory_space<vmem>>, vector<2x1x4xf32>
    %57 = vector.shape_cast %56 : vector<2x1x4xf32> to vector<2x4xf32>
    %58 = arith.truncf %57 : vector<2x4xf32> to vector<2x4xbf16>
    %cst_39 = arith.constant dense<0.000000e+00> : vector<2x128xf32>
    %59 = tpu.matmul %58, %4, %cst_39 {dimension_numbers = #tpu.dot_dimension_numbers<[1], [0], [0], [1], [0, 0, 1, 1], [], []>} : vector<2x4xbf16>, vector<4x128xbf16>, vector<2x128xf32> -> vector<2x128xf32>
    %60 = vector.broadcast %6 : vector<1x128xf32> to vector<2x128xf32>
    %61 = arith.addf %59, %60 : vector<2x128xf32>
    %c56 = arith.constant 56 : index
    %c0_40 = arith.constant 0 : index
    %62 = vector.load %arg7[%c56, %c0_40] : memref<64x128xf32, #tpu.memory_space<vmem>>, vector<2x128xf32>
    tpu.vector_store %arg7[%c56, %c0_40], %61 {strides = array<i32>} : memref<64x128xf32, #tpu.memory_space<vmem>>, vector<2x128xf32>,
    %c0_41 = arith.constant 0 : index
    %c0_42 = arith.constant 0 : index
    %c0_43 = arith.constant 0 : index
    %63 = vector.load %arg2[%c0_41, %c0_42, %c0_43] : memref<3x32x128xbf16, #tpu.memory_space<vmem>>, vector<1x32x128xbf16>
    %64 = vector.shape_cast %63 : vector<1x32x128xbf16> to vector<32x128xbf16>
    %c1_44 = arith.constant 1 : index
    %c0_45 = arith.constant 0 : index
    %c0_46 = arith.constant 0 : index
    %65 = vector.load %arg1[%c1_44, %c0_45, %c0_46] : memref<3x32x128xbf16, #tpu.memory_space<vmem>>, vector<1x32x128xbf16>
    %66 = vector.shape_cast %65 : vector<1x32x128xbf16> to vector<32x128xbf16>
    %c1_47 = arith.constant 1 : index
    %c0_48 = arith.constant 0 : index
    %c0_49 = arith.constant 0 : index
    %67 = vector.load %arg3[%c1_47, %c0_48, %c0_49] : memref<3x1x128xf32, #tpu.memory_space<vmem>>, vector<1x1x128xf32>
    %68 = vector.shape_cast %67 : vector<1x1x128xf32> to vector<1x128xf32>
    %c0_50 = arith.constant 0 : index
    %c0_51 = arith.constant 0 : index
    %69 = vector.load %arg7[%c0_50, %c0_51] : memref<64x128xf32, #tpu.memory_space<vmem>>, vector<8x128xf32>
    %70 = arith.negf %69 : vector<8x128xf32>
    %71 = math.exp %70 : vector<8x128xf32>
    %cst_52 = arith.constant 1.000000e+00 : f32
    %72 = vector.broadcast %cst_52 : f32 to vector<8x128xf32>
    %73 = arith.addf %72, %71 : vector<8x128xf32>
    %74 = arith.divf %72, %73 : vector<8x128xf32>
    %75 = math.tanh %69 : vector<8x128xf32>
    %76 = vector.extract_strided_slice %74 {offsets = [0, 0], sizes = [8, 32], strides = [1, 1]} : vector<8x128xf32> to vector<8x32xf32>
    %77 = vector.extract_strided_slice %74 {offsets = [0, 64], sizes = [8, 32], strides = [1, 1]} : vector<8x128xf32> to vector<8x32xf32>
    %78 = vector.extract_strided_slice %75 {offsets = [0, 96], sizes = [8, 32], strides = [1, 1]} : vector<8x128xf32> to vector<8x32xf32>
    %79 = arith.mulf %76, %78 : vector<8x32xf32>
    %80 = math.tanh %79 : vector<8x32xf32>
    %81 = arith.mulf %77, %80 : vector<8x32xf32>
    %82 = arith.truncf %81 : vector<8x32xf32> to vector<8x32xbf16>
    %cst_53 = arith.constant dense<0.000000e+00> : vector<8x128xf32>
    %83 = tpu.matmul %82, %66, %cst_53 {dimension_numbers = #tpu.dot_dimension_numbers<[1], [0], [0], [1], [0, 0, 1, 1], [], []>} : vector<8x32xbf16>, vector<32x128xbf16>, vector<8x128xf32> -> vector<8x128xf32>
    %84 = vector.broadcast %68 : vector<1x128xf32> to vector<8x128xf32>
    %85 = arith.addf %83, %84 : vector<8x128xf32>
    %c0_54 = arith.constant 0 : index
    %c0_55 = arith.constant 0 : index
    %86 = vector.load %arg8[%c0_54, %c0_55] : memref<64x128xf32, #tpu.memory_space<vmem>>, vector<8x128xf32>
    tpu.vector_store %arg8[%c0_54, %c0_55], %85 {strides = array<i32>} : memref<64x128xf32, #tpu.memory_space<vmem>>, vector<8x128xf32>,
    %c8_56 = arith.constant 8 : index
    %c0_57 = arith.constant 0 : index
    %87 = vector.load %arg7[%c8_56, %c0_57] : memref<64x128xf32, #tpu.memory_space<vmem>>, vector<8x128xf32>
    %cst_58 = arith.constant dense<0.000000e+00> : vector<8x128xf32>
    %88 = tpu.matmul %82, %64, %cst_58 {dimension_numbers = #tpu.dot_dimension_numbers<[1], [0], [0], [1], [0, 0, 1, 1], [], []>} : vector<8x32xbf16>, vector<32x128xbf16>, vector<8x128xf32> -> vector<8x128xf32>
    %89 = arith.addf %87, %88 : vector<8x128xf32>
    %90 = arith.negf %89 : vector<8x128xf32>
    %91 = math.exp %90 : vector<8x128xf32>
    %cst_59 = arith.constant 1.000000e+00 : f32
    %92 = vector.broadcast %cst_59 : f32 to vector<8x128xf32>
    %93 = arith.addf %92, %91 : vector<8x128xf32>
    %94 = arith.divf %92, %93 : vector<8x128xf32>
    %95 = math.tanh %89 : vector<8x128xf32>
    %96 = vector.extract_strided_slice %94 {offsets = [0, 0], sizes = [8, 32], strides = [1, 1]} : vector<8x128xf32> to vector<8x32xf32>
    %97 = vector.extract_strided_slice %94 {offsets = [0, 32], sizes = [8, 32], strides = [1, 1]} : vector<8x128xf32> to vector<8x32xf32>
    %98 = vector.extract_strided_slice %94 {offsets = [0, 64], sizes = [8, 32], strides = [1, 1]} : vector<8x128xf32> to vector<8x32xf32>
    %99 = vector.extract_strided_slice %95 {offsets = [0, 96], sizes = [8, 32], strides = [1, 1]} : vector<8x128xf32> to vector<8x32xf32>
    %100 = arith.mulf %97, %79 : vector<8x32xf32>
    %101 = arith.mulf %96, %99 : vector<8x32xf32>
    %102 = arith.addf %100, %101 : vector<8x32xf32>
    %103 = math.tanh %102 : vector<8x32xf32>
    %104 = arith.mulf %98, %103 : vector<8x32xf32>
    %105 = arith.truncf %104 : vector<8x32xf32> to vector<8x32xbf16>
    %cst_60 = arith.constant dense<0.000000e+00> : vector<8x128xf32>
    %106 = tpu.matmul %105, %66, %cst_60 {dimension_numbers = #tpu.dot_dimension_numbers<[1], [0], [0], [1], [0, 0, 1, 1], [], []>} : vector<8x32xbf16>, vector<32x128xbf16>, vector<8x128xf32> -> vector<8x128xf32>
    %107 = vector.broadcast %68 : vector<1x128xf32> to vector<8x128xf32>
    %108 = arith.addf %106, %107 : vector<8x128xf32>
    %c8_61 = arith.constant 8 : index
    %c0_62 = arith.constant 0 : index
    %109 = vector.load %arg8[%c8_61, %c0_62] : memref<64x128xf32, #tpu.memory_space<vmem>>, vector<8x128xf32>
    tpu.vector_store %arg8[%c8_61, %c0_62], %108 {strides = array<i32>} : memref<64x128xf32, #tpu.memory_space<vmem>>, vector<8x128xf32>,
    %c16_63 = arith.constant 16 : index
    %c0_64 = arith.constant 0 : index
    %110 = vector.load %arg7[%c16_63, %c0_64] : memref<64x128xf32, #tpu.memory_space<vmem>>, vector<8x128xf32>
    %cst_65 = arith.constant dense<0.000000e+00> : vector<8x128xf32>
    %111 = tpu.matmul %105, %64, %cst_65 {dimension_numbers = #tpu.dot_dimension_numbers<[1], [0], [0], [1], [0, 0, 1, 1], [], []>} : vector<8x32xbf16>, vector<32x128xbf16>, vector<8x128xf32> -> vector<8x128xf32>
    %112 = arith.addf %110, %111 : vector<8x128xf32>
    %113 = arith.negf %112 : vector<8x128xf32>
    %114 = math.exp %113 : vector<8x128xf32>
    %cst_66 = arith.constant 1.000000e+00 : f32
    %115 = vector.broadcast %cst_66 : f32 to vector<8x128xf32>
    %116 = arith.addf %115, %114 : vector<8x128xf32>
    %117 = arith.divf %115, %116 : vector<8x128xf32>
    %118 = math.tanh %112 : vector<8x128xf32>
    %119 = vector.extract_strided_slice %117 {offsets = [0, 0], sizes = [8, 32], strides = [1, 1]} : vector<8x128xf32> to vector<8x32xf32>
    %120 = vector.extract_strided_slice %117 {offsets = [0, 32], sizes = [8, 32], strides = [1, 1]} : vector<8x128xf32> to vector<8x32xf32>
    %121 = vector.extract_strided_slice %117 {offsets = [0, 64], sizes = [8, 32], strides = [1, 1]} : vector<8x128xf32> to vector<8x32xf32>
    %122 = vector.extract_strided_slice %118 {offsets = [0, 96], sizes = [8, 32], strides = [1, 1]} : vector<8x128xf32> to vector<8x32xf32>
    %123 = arith.mulf %120, %102 : vector<8x32xf32>
    %124 = arith.mulf %119, %122 : vector<8x32xf32>
    %125 = arith.addf %123, %124 : vector<8x32xf32>
    %126 = math.tanh %125 : vector<8x32xf32>
    %127 = arith.mulf %121, %126 : vector<8x32xf32>
    %128 = arith.truncf %127 : vector<8x32xf32> to vector<8x32xbf16>
    %cst_67 = arith.constant dense<0.000000e+00> : vector<8x128xf32>
    %129 = tpu.matmul %128, %66, %cst_67 {dimension_numbers = #tpu.dot_dimension_numbers<[1], [0], [0], [1], [0, 0, 1, 1], [], []>} : vector<8x32xbf16>, vector<32x128xbf16>, vector<8x128xf32> -> vector<8x128xf32>
    %130 = vector.broadcast %68 : vector<1x128xf32> to vector<8x128xf32>
    %131 = arith.addf %129, %130 : vector<8x128xf32>
    %c16_68 = arith.constant 16 : index
    %c0_69 = arith.constant 0 : index
    %132 = vector.load %arg8[%c16_68, %c0_69] : memref<64x128xf32, #tpu.memory_space<vmem>>, vector<8x128xf32>
    tpu.vector_store %arg8[%c16_68, %c0_69], %131 {strides = array<i32>} : memref<64x128xf32, #tpu.memory_space<vmem>>, vector<8x128xf32>,
    %c24_70 = arith.constant 24 : index
    %c0_71 = arith.constant 0 : index
    %133 = vector.load %arg7[%c24_70, %c0_71] : memref<64x128xf32, #tpu.memory_space<vmem>>, vector<8x128xf32>
    %cst_72 = arith.constant dense<0.000000e+00> : vector<8x128xf32>
    %134 = tpu.matmul %128, %64, %cst_72 {dimension_numbers = #tpu.dot_dimension_numbers<[1], [0], [0], [1], [0, 0, 1, 1], [], []>} : vector<8x32xbf16>, vector<32x128xbf16>, vector<8x128xf32> -> vector<8x128xf32>
    %135 = arith.addf %133, %134 : vector<8x128xf32>
    %136 = arith.negf %135 : vector<8x128xf32>
    %137 = math.exp %136 : vector<8x128xf32>
    %cst_73 = arith.constant 1.000000e+00 : f32
    %138 = vector.broadcast %cst_73 : f32 to vector<8x128xf32>
    %139 = arith.addf %138, %137 : vector<8x128xf32>
    %140 = arith.divf %138, %139 : vector<8x128xf32>
    %141 = math.tanh %135 : vector<8x128xf32>
    %142 = vector.extract_strided_slice %140 {offsets = [0, 0], sizes = [8, 32], strides = [1, 1]} : vector<8x128xf32> to vector<8x32xf32>
    %143 = vector.extract_strided_slice %140 {offsets = [0, 32], sizes = [8, 32], strides = [1, 1]} : vector<8x128xf32> to vector<8x32xf32>
    %144 = vector.extract_strided_slice %140 {offsets = [0, 64], sizes = [8, 32], strides = [1, 1]} : vector<8x128xf32> to vector<8x32xf32>
    %145 = vector.extract_strided_slice %141 {offsets = [0, 96], sizes = [8, 32], strides = [1, 1]} : vector<8x128xf32> to vector<8x32xf32>
    %146 = arith.mulf %143, %125 : vector<8x32xf32>
    %147 = arith.mulf %142, %145 : vector<8x32xf32>
    %148 = arith.addf %146, %147 : vector<8x32xf32>
    %149 = math.tanh %148 : vector<8x32xf32>
    %150 = arith.mulf %144, %149 : vector<8x32xf32>
    %151 = arith.truncf %150 : vector<8x32xf32> to vector<8x32xbf16>
    %cst_74 = arith.constant dense<0.000000e+00> : vector<8x128xf32>
    %152 = tpu.matmul %151, %66, %cst_74 {dimension_numbers = #tpu.dot_dimension_numbers<[1], [0], [0], [1], [0, 0, 1, 1], [], []>} : vector<8x32xbf16>, vector<32x128xbf16>, vector<8x128xf32> -> vector<8x128xf32>
    %153 = vector.broadcast %68 : vector<1x128xf32> to vector<8x128xf32>
    %154 = arith.addf %152, %153 : vector<8x128xf32>
    %c24_75 = arith.constant 24 : index
    %c0_76 = arith.constant 0 : index
    %155 = vector.load %arg8[%c24_75, %c0_76] : memref<64x128xf32, #tpu.memory_space<vmem>>, vector<8x128xf32>
    tpu.vector_store %arg8[%c24_75, %c0_76], %154 {strides = array<i32>} : memref<64x128xf32, #tpu.memory_space<vmem>>, vector<8x128xf32>,
    %c32_77 = arith.constant 32 : index
    %c0_78 = arith.constant 0 : index
    %156 = vector.load %arg7[%c32_77, %c0_78] : memref<64x128xf32, #tpu.memory_space<vmem>>, vector<8x128xf32>
    %cst_79 = arith.constant dense<0.000000e+00> : vector<8x128xf32>
    %157 = tpu.matmul %151, %64, %cst_79 {dimension_numbers = #tpu.dot_dimension_numbers<[1], [0], [0], [1], [0, 0, 1, 1], [], []>} : vector<8x32xbf16>, vector<32x128xbf16>, vector<8x128xf32> -> vector<8x128xf32>
    %158 = arith.addf %156, %157 : vector<8x128xf32>
    %159 = arith.negf %158 : vector<8x128xf32>
    %160 = math.exp %159 : vector<8x128xf32>
    %cst_80 = arith.constant 1.000000e+00 : f32
    %161 = vector.broadcast %cst_80 : f32 to vector<8x128xf32>
    %162 = arith.addf %161, %160 : vector<8x128xf32>
    %163 = arith.divf %161, %162 : vector<8x128xf32>
    %164 = math.tanh %158 : vector<8x128xf32>
    %165 = vector.extract_strided_slice %163 {offsets = [0, 0], sizes = [8, 32], strides = [1, 1]} : vector<8x128xf32> to vector<8x32xf32>
    %166 = vector.extract_strided_slice %163 {offsets = [0, 32], sizes = [8, 32], strides = [1, 1]} : vector<8x128xf32> to vector<8x32xf32>
    %167 = vector.extract_strided_slice %163 {offsets = [0, 64], sizes = [8, 32], strides = [1, 1]} : vector<8x128xf32> to vector<8x32xf32>
    %168 = vector.extract_strided_slice %164 {offsets = [0, 96], sizes = [8, 32], strides = [1, 1]} : vector<8x128xf32> to vector<8x32xf32>
    %169 = arith.mulf %166, %148 : vector<8x32xf32>
    %170 = arith.mulf %165, %168 : vector<8x32xf32>
    %171 = arith.addf %169, %170 : vector<8x32xf32>
    %172 = math.tanh %171 : vector<8x32xf32>
    %173 = arith.mulf %167, %172 : vector<8x32xf32>
    %174 = arith.truncf %173 : vector<8x32xf32> to vector<8x32xbf16>
    %cst_81 = arith.constant dense<0.000000e+00> : vector<8x128xf32>
    %175 = tpu.matmul %174, %66, %cst_81 {dimension_numbers = #tpu.dot_dimension_numbers<[1], [0], [0], [1], [0, 0, 1, 1], [], []>} : vector<8x32xbf16>, vector<32x128xbf16>, vector<8x128xf32> -> vector<8x128xf32>
    %176 = vector.broadcast %68 : vector<1x128xf32> to vector<8x128xf32>
    %177 = arith.addf %175, %176 : vector<8x128xf32>
    %c32_82 = arith.constant 32 : index
    %c0_83 = arith.constant 0 : index
    %178 = vector.load %arg8[%c32_82, %c0_83] : memref<64x128xf32, #tpu.memory_space<vmem>>, vector<8x128xf32>
    tpu.vector_store %arg8[%c32_82, %c0_83], %177 {strides = array<i32>} : memref<64x128xf32, #tpu.memory_space<vmem>>, vector<8x128xf32>,
    %c40_84 = arith.constant 40 : index
    %c0_85 = arith.constant 0 : index
    %179 = vector.load %arg7[%c40_84, %c0_85] : memref<64x128xf32, #tpu.memory_space<vmem>>, vector<8x128xf32>
    %cst_86 = arith.constant dense<0.000000e+00> : vector<8x128xf32>
    %180 = tpu.matmul %174, %64, %cst_86 {dimension_numbers = #tpu.dot_dimension_numbers<[1], [0], [0], [1], [0, 0, 1, 1], [], []>} : vector<8x32xbf16>, vector<32x128xbf16>, vector<8x128xf32> -> vector<8x128xf32>
    %181 = arith.addf %179, %180 : vector<8x128xf32>
    %182 = arith.negf %181 : vector<8x128xf32>
    %183 = math.exp %182 : vector<8x128xf32>
    %cst_87 = arith.constant 1.000000e+00 : f32
    %184 = vector.broadcast %cst_87 : f32 to vector<8x128xf32>
    %185 = arith.addf %184, %183 : vector<8x128xf32>
    %186 = arith.divf %184, %185 : vector<8x128xf32>
    %187 = math.tanh %181 : vector<8x128xf32>
    %188 = vector.extract_strided_slice %186 {offsets = [0, 0], sizes = [8, 32], strides = [1, 1]} : vector<8x128xf32> to vector<8x32xf32>
    %189 = vector.extract_strided_slice %186 {offsets = [0, 32], sizes = [8, 32], strides = [1, 1]} : vector<8x128xf32> to vector<8x32xf32>
    %190 = vector.extract_strided_slice %186 {offsets = [0, 64], sizes = [8, 32], strides = [1, 1]} : vector<8x128xf32> to vector<8x32xf32>
    %191 = vector.extract_strided_slice %187 {offsets = [0, 96], sizes = [8, 32], strides = [1, 1]} : vector<8x128xf32> to vector<8x32xf32>
    %192 = arith.mulf %189, %171 : vector<8x32xf32>
    %193 = arith.mulf %188, %191 : vector<8x32xf32>
    %194 = arith.addf %192, %193 : vector<8x32xf32>
    %195 = math.tanh %194 : vector<8x32xf32>
    %196 = arith.mulf %190, %195 : vector<8x32xf32>
    %197 = arith.truncf %196 : vector<8x32xf32> to vector<8x32xbf16>
    %cst_88 = arith.constant dense<0.000000e+00> : vector<8x128xf32>
    %198 = tpu.matmul %197, %66, %cst_88 {dimension_numbers = #tpu.dot_dimension_numbers<[1], [0], [0], [1], [0, 0, 1, 1], [], []>} : vector<8x32xbf16>, vector<32x128xbf16>, vector<8x128xf32> -> vector<8x128xf32>
    %199 = vector.broadcast %68 : vector<1x128xf32> to vector<8x128xf32>
    %200 = arith.addf %198, %199 : vector<8x128xf32>
    %c40_89 = arith.constant 40 : index
    %c0_90 = arith.constant 0 : index
    %201 = vector.load %arg8[%c40_89, %c0_90] : memref<64x128xf32, #tpu.memory_space<vmem>>, vector<8x128xf32>
    tpu.vector_store %arg8[%c40_89, %c0_90], %200 {strides = array<i32>} : memref<64x128xf32, #tpu.memory_space<vmem>>, vector<8x128xf32>,
    %c48_91 = arith.constant 48 : index
    %c0_92 = arith.constant 0 : index
    %202 = vector.load %arg7[%c48_91, %c0_92] : memref<64x128xf32, #tpu.memory_space<vmem>>, vector<8x128xf32>
    %cst_93 = arith.constant dense<0.000000e+00> : vector<8x128xf32>
    %203 = tpu.matmul %197, %64, %cst_93 {dimension_numbers = #tpu.dot_dimension_numbers<[1], [0], [0], [1], [0, 0, 1, 1], [], []>} : vector<8x32xbf16>, vector<32x128xbf16>, vector<8x128xf32> -> vector<8x128xf32>
    %204 = arith.addf %202, %203 : vector<8x128xf32>
    %205 = arith.negf %204 : vector<8x128xf32>
    %206 = math.exp %205 : vector<8x128xf32>
    %cst_94 = arith.constant 1.000000e+00 : f32
    %207 = vector.broadcast %cst_94 : f32 to vector<8x128xf32>
    %208 = arith.addf %207, %206 : vector<8x128xf32>
    %209 = arith.divf %207, %208 : vector<8x128xf32>
    %210 = math.tanh %204 : vector<8x128xf32>
    %211 = vector.extract_strided_slice %209 {offsets = [0, 0], sizes = [8, 32], strides = [1, 1]} : vector<8x128xf32> to vector<8x32xf32>
    %212 = vector.extract_strided_slice %209 {offsets = [0, 32], sizes = [8, 32], strides = [1, 1]} : vector<8x128xf32> to vector<8x32xf32>
    %213 = vector.extract_strided_slice %209 {offsets = [0, 64], sizes = [8, 32], strides = [1, 1]} : vector<8x128xf32> to vector<8x32xf32>
    %214 = vector.extract_strided_slice %210 {offsets = [0, 96], sizes = [8, 32], strides = [1, 1]} : vector<8x128xf32> to vector<8x32xf32>
    %215 = arith.mulf %212, %194 : vector<8x32xf32>
    %216 = arith.mulf %211, %214 : vector<8x32xf32>
    %217 = arith.addf %215, %216 : vector<8x32xf32>
    %218 = math.tanh %217 : vector<8x32xf32>
    %219 = arith.mulf %213, %218 : vector<8x32xf32>
    %220 = arith.truncf %219 : vector<8x32xf32> to vector<8x32xbf16>
    %cst_95 = arith.constant dense<0.000000e+00> : vector<8x128xf32>
    %221 = tpu.matmul %220, %66, %cst_95 {dimension_numbers = #tpu.dot_dimension_numbers<[1], [0], [0], [1], [0, 0, 1, 1], [], []>} : vector<8x32xbf16>, vector<32x128xbf16>, vector<8x128xf32> -> vector<8x128xf32>
    %222 = vector.broadcast %68 : vector<1x128xf32> to vector<8x128xf32>
    %223 = arith.addf %221, %222 : vector<8x128xf32>
    %c48_96 = arith.constant 48 : index
    %c0_97 = arith.constant 0 : index
    %224 = vector.load %arg8[%c48_96, %c0_97] : memref<64x128xf32, #tpu.memory_space<vmem>>, vector<8x128xf32>
    tpu.vector_store %arg8[%c48_96, %c0_97], %223 {strides = array<i32>} : memref<64x128xf32, #tpu.memory_space<vmem>>, vector<8x128xf32>,
    %c56_98 = arith.constant 56 : index
    %c0_99 = arith.constant 0 : index
    %225 = vector.load %arg7[%c56_98, %c0_99] : memref<64x128xf32, #tpu.memory_space<vmem>>, vector<8x128xf32>
    %cst_100 = arith.constant dense<0.000000e+00> : vector<8x128xf32>
    %226 = tpu.matmul %220, %64, %cst_100 {dimension_numbers = #tpu.dot_dimension_numbers<[1], [0], [0], [1], [0, 0, 1, 1], [], []>} : vector<8x32xbf16>, vector<32x128xbf16>, vector<8x128xf32> -> vector<8x128xf32>
    %227 = arith.addf %225, %226 : vector<8x128xf32>
    %228 = arith.negf %227 : vector<8x128xf32>
    %229 = math.exp %228 : vector<8x128xf32>
    %cst_101 = arith.constant 1.000000e+00 : f32
    %230 = vector.broadcast %cst_101 : f32 to vector<8x128xf32>
    %231 = arith.addf %230, %229 : vector<8x128xf32>
    %232 = arith.divf %230, %231 : vector<8x128xf32>
    %233 = math.tanh %227 : vector<8x128xf32>
    %234 = vector.extract_strided_slice %232 {offsets = [0, 0], sizes = [8, 32], strides = [1, 1]} : vector<8x128xf32> to vector<8x32xf32>
    %235 = vector.extract_strided_slice %232 {offsets = [0, 32], sizes = [8, 32], strides = [1, 1]} : vector<8x128xf32> to vector<8x32xf32>
    %236 = vector.extract_strided_slice %232 {offsets = [0, 64], sizes = [8, 32], strides = [1, 1]} : vector<8x128xf32> to vector<8x32xf32>
    %237 = vector.extract_strided_slice %233 {offsets = [0, 96], sizes = [8, 32], strides = [1, 1]} : vector<8x128xf32> to vector<8x32xf32>
    %238 = arith.mulf %235, %217 : vector<8x32xf32>
    %239 = arith.mulf %234, %237 : vector<8x32xf32>
    %240 = arith.addf %238, %239 : vector<8x32xf32>
    %241 = math.tanh %240 : vector<8x32xf32>
    %242 = arith.mulf %236, %241 : vector<8x32xf32>
    %243 = arith.truncf %242 : vector<8x32xf32> to vector<8x32xbf16>
    %cst_102 = arith.constant dense<0.000000e+00> : vector<8x128xf32>
    %244 = tpu.matmul %243, %66, %cst_102 {dimension_numbers = #tpu.dot_dimension_numbers<[1], [0], [0], [1], [0, 0, 1, 1], [], []>} : vector<8x32xbf16>, vector<32x128xbf16>, vector<8x128xf32> -> vector<8x128xf32>
    %245 = vector.broadcast %68 : vector<1x128xf32> to vector<8x128xf32>
    %246 = arith.addf %244, %245 : vector<8x128xf32>
    %c56_103 = arith.constant 56 : index
    %c0_104 = arith.constant 0 : index
    %247 = vector.load %arg8[%c56_103, %c0_104] : memref<64x128xf32, #tpu.memory_space<vmem>>, vector<8x128xf32>
    tpu.vector_store %arg8[%c56_103, %c0_104], %246 {strides = array<i32>} : memref<64x128xf32, #tpu.memory_space<vmem>>, vector<8x128xf32>,
    %c1_105 = arith.constant 1 : index
    %c0_106 = arith.constant 0 : index
    %c0_107 = arith.constant 0 : index
    %248 = vector.load %arg2[%c1_105, %c0_106, %c0_107] : memref<3x32x128xbf16, #tpu.memory_space<vmem>>, vector<1x32x128xbf16>
    %249 = vector.shape_cast %248 : vector<1x32x128xbf16> to vector<32x128xbf16>
    %c2_108 = arith.constant 2 : index
    %c0_109 = arith.constant 0 : index
    %c0_110 = arith.constant 0 : index
    %250 = vector.load %arg1[%c2_108, %c0_109, %c0_110] : memref<3x32x128xbf16, #tpu.memory_space<vmem>>, vector<1x32x128xbf16>
    %251 = vector.shape_cast %250 : vector<1x32x128xbf16> to vector<32x128xbf16>
    %c2_111 = arith.constant 2 : index
    %c0_112 = arith.constant 0 : index
    %c0_113 = arith.constant 0 : index
    %252 = vector.load %arg3[%c2_111, %c0_112, %c0_113] : memref<3x1x128xf32, #tpu.memory_space<vmem>>, vector<1x1x128xf32>
    %253 = vector.shape_cast %252 : vector<1x1x128xf32> to vector<1x128xf32>
    %c0_114 = arith.constant 0 : index
    %c0_115 = arith.constant 0 : index
    %254 = vector.load %arg8[%c0_114, %c0_115] : memref<64x128xf32, #tpu.memory_space<vmem>>, vector<8x128xf32>
    %255 = arith.negf %254 : vector<8x128xf32>
    %256 = math.exp %255 : vector<8x128xf32>
    %cst_116 = arith.constant 1.000000e+00 : f32
    %257 = vector.broadcast %cst_116 : f32 to vector<8x128xf32>
    %258 = arith.addf %257, %256 : vector<8x128xf32>
    %259 = arith.divf %257, %258 : vector<8x128xf32>
    %260 = math.tanh %254 : vector<8x128xf32>
    %261 = vector.extract_strided_slice %259 {offsets = [0, 0], sizes = [8, 32], strides = [1, 1]} : vector<8x128xf32> to vector<8x32xf32>
    %262 = vector.extract_strided_slice %259 {offsets = [0, 64], sizes = [8, 32], strides = [1, 1]} : vector<8x128xf32> to vector<8x32xf32>
    %263 = vector.extract_strided_slice %260 {offsets = [0, 96], sizes = [8, 32], strides = [1, 1]} : vector<8x128xf32> to vector<8x32xf32>
    %264 = arith.mulf %261, %263 : vector<8x32xf32>
    %265 = math.tanh %264 : vector<8x32xf32>
    %266 = arith.mulf %262, %265 : vector<8x32xf32>
    %267 = arith.truncf %266 : vector<8x32xf32> to vector<8x32xbf16>
    %cst_117 = arith.constant dense<0.000000e+00> : vector<8x128xf32>
    %268 = tpu.matmul %267, %251, %cst_117 {dimension_numbers = #tpu.dot_dimension_numbers<[1], [0], [0], [1], [0, 0, 1, 1], [], []>} : vector<8x32xbf16>, vector<32x128xbf16>, vector<8x128xf32> -> vector<8x128xf32>
    %269 = vector.broadcast %253 : vector<1x128xf32> to vector<8x128xf32>
    %270 = arith.addf %268, %269 : vector<8x128xf32>
    %c0_118 = arith.constant 0 : index
    %c0_119 = arith.constant 0 : index
    %271 = vector.load %arg7[%c0_118, %c0_119] : memref<64x128xf32, #tpu.memory_space<vmem>>, vector<8x128xf32>
    tpu.vector_store %arg7[%c0_118, %c0_119], %270 {strides = array<i32>} : memref<64x128xf32, #tpu.memory_space<vmem>>, vector<8x128xf32>,
    %c8_120 = arith.constant 8 : index
    %c0_121 = arith.constant 0 : index
    %272 = vector.load %arg8[%c8_120, %c0_121] : memref<64x128xf32, #tpu.memory_space<vmem>>, vector<8x128xf32>
    %cst_122 = arith.constant dense<0.000000e+00> : vector<8x128xf32>
    %273 = tpu.matmul %267, %249, %cst_122 {dimension_numbers = #tpu.dot_dimension_numbers<[1], [0], [0], [1], [0, 0, 1, 1], [], []>} : vector<8x32xbf16>, vector<32x128xbf16>, vector<8x128xf32> -> vector<8x128xf32>
    %274 = arith.addf %272, %273 : vector<8x128xf32>
    %275 = arith.negf %274 : vector<8x128xf32>
    %276 = math.exp %275 : vector<8x128xf32>
    %cst_123 = arith.constant 1.000000e+00 : f32
    %277 = vector.broadcast %cst_123 : f32 to vector<8x128xf32>
    %278 = arith.addf %277, %276 : vector<8x128xf32>
    %279 = arith.divf %277, %278 : vector<8x128xf32>
    %280 = math.tanh %274 : vector<8x128xf32>
    %281 = vector.extract_strided_slice %279 {offsets = [0, 0], sizes = [8, 32], strides = [1, 1]} : vector<8x128xf32> to vector<8x32xf32>
    %282 = vector.extract_strided_slice %279 {offsets = [0, 32], sizes = [8, 32], strides = [1, 1]} : vector<8x128xf32> to vector<8x32xf32>
    %283 = vector.extract_strided_slice %279 {offsets = [0, 64], sizes = [8, 32], strides = [1, 1]} : vector<8x128xf32> to vector<8x32xf32>
    %284 = vector.extract_strided_slice %280 {offsets = [0, 96], sizes = [8, 32], strides = [1, 1]} : vector<8x128xf32> to vector<8x32xf32>
    %285 = arith.mulf %282, %264 : vector<8x32xf32>
    %286 = arith.mulf %281, %284 : vector<8x32xf32>
    %287 = arith.addf %285, %286 : vector<8x32xf32>
    %288 = math.tanh %287 : vector<8x32xf32>
    %289 = arith.mulf %283, %288 : vector<8x32xf32>
    %290 = arith.truncf %289 : vector<8x32xf32> to vector<8x32xbf16>
    %cst_124 = arith.constant dense<0.000000e+00> : vector<8x128xf32>
    %291 = tpu.matmul %290, %251, %cst_124 {dimension_numbers = #tpu.dot_dimension_numbers<[1], [0], [0], [1], [0, 0, 1, 1], [], []>} : vector<8x32xbf16>, vector<32x128xbf16>, vector<8x128xf32> -> vector<8x128xf32>
    %292 = vector.broadcast %253 : vector<1x128xf32> to vector<8x128xf32>
    %293 = arith.addf %291, %292 : vector<8x128xf32>
    %c8_125 = arith.constant 8 : index
    %c0_126 = arith.constant 0 : index
    %294 = vector.load %arg7[%c8_125, %c0_126] : memref<64x128xf32, #tpu.memory_space<vmem>>, vector<8x128xf32>
    tpu.vector_store %arg7[%c8_125, %c0_126], %293 {strides = array<i32>} : memref<64x128xf32, #tpu.memory_space<vmem>>, vector<8x128xf32>,
    %c16_127 = arith.constant 16 : index
    %c0_128 = arith.constant 0 : index
    %295 = vector.load %arg8[%c16_127, %c0_128] : memref<64x128xf32, #tpu.memory_space<vmem>>, vector<8x128xf32>
    %cst_129 = arith.constant dense<0.000000e+00> : vector<8x128xf32>
    %296 = tpu.matmul %290, %249, %cst_129 {dimension_numbers = #tpu.dot_dimension_numbers<[1], [0], [0], [1], [0, 0, 1, 1], [], []>} : vector<8x32xbf16>, vector<32x128xbf16>, vector<8x128xf32> -> vector<8x128xf32>
    %297 = arith.addf %295, %296 : vector<8x128xf32>
    %298 = arith.negf %297 : vector<8x128xf32>
    %299 = math.exp %298 : vector<8x128xf32>
    %cst_130 = arith.constant 1.000000e+00 : f32
    %300 = vector.broadcast %cst_130 : f32 to vector<8x128xf32>
    %301 = arith.addf %300, %299 : vector<8x128xf32>
    %302 = arith.divf %300, %301 : vector<8x128xf32>
    %303 = math.tanh %297 : vector<8x128xf32>
    %304 = vector.extract_strided_slice %302 {offsets = [0, 0], sizes = [8, 32], strides = [1, 1]} : vector<8x128xf32> to vector<8x32xf32>
    %305 = vector.extract_strided_slice %302 {offsets = [0, 32], sizes = [8, 32], strides = [1, 1]} : vector<8x128xf32> to vector<8x32xf32>
    %306 = vector.extract_strided_slice %302 {offsets = [0, 64], sizes = [8, 32], strides = [1, 1]} : vector<8x128xf32> to vector<8x32xf32>
    %307 = vector.extract_strided_slice %303 {offsets = [0, 96], sizes = [8, 32], strides = [1, 1]} : vector<8x128xf32> to vector<8x32xf32>
    %308 = arith.mulf %305, %287 : vector<8x32xf32>
    %309 = arith.mulf %304, %307 : vector<8x32xf32>
    %310 = arith.addf %308, %309 : vector<8x32xf32>
    %311 = math.tanh %310 : vector<8x32xf32>
    %312 = arith.mulf %306, %311 : vector<8x32xf32>
    %313 = arith.truncf %312 : vector<8x32xf32> to vector<8x32xbf16>
    %cst_131 = arith.constant dense<0.000000e+00> : vector<8x128xf32>
    %314 = tpu.matmul %313, %251, %cst_131 {dimension_numbers = #tpu.dot_dimension_numbers<[1], [0], [0], [1], [0, 0, 1, 1], [], []>} : vector<8x32xbf16>, vector<32x128xbf16>, vector<8x128xf32> -> vector<8x128xf32>
    %315 = vector.broadcast %253 : vector<1x128xf32> to vector<8x128xf32>
    %316 = arith.addf %314, %315 : vector<8x128xf32>
    %c16_132 = arith.constant 16 : index
    %c0_133 = arith.constant 0 : index
    %317 = vector.load %arg7[%c16_132, %c0_133] : memref<64x128xf32, #tpu.memory_space<vmem>>, vector<8x128xf32>
    tpu.vector_store %arg7[%c16_132, %c0_133], %316 {strides = array<i32>} : memref<64x128xf32, #tpu.memory_space<vmem>>, vector<8x128xf32>,
    %c24_134 = arith.constant 24 : index
    %c0_135 = arith.constant 0 : index
    %318 = vector.load %arg8[%c24_134, %c0_135] : memref<64x128xf32, #tpu.memory_space<vmem>>, vector<8x128xf32>
    %cst_136 = arith.constant dense<0.000000e+00> : vector<8x128xf32>
    %319 = tpu.matmul %313, %249, %cst_136 {dimension_numbers = #tpu.dot_dimension_numbers<[1], [0], [0], [1], [0, 0, 1, 1], [], []>} : vector<8x32xbf16>, vector<32x128xbf16>, vector<8x128xf32> -> vector<8x128xf32>
    %320 = arith.addf %318, %319 : vector<8x128xf32>
    %321 = arith.negf %320 : vector<8x128xf32>
    %322 = math.exp %321 : vector<8x128xf32>
    %cst_137 = arith.constant 1.000000e+00 : f32
    %323 = vector.broadcast %cst_137 : f32 to vector<8x128xf32>
    %324 = arith.addf %323, %322 : vector<8x128xf32>
    %325 = arith.divf %323, %324 : vector<8x128xf32>
    %326 = math.tanh %320 : vector<8x128xf32>
    %327 = vector.extract_strided_slice %325 {offsets = [0, 0], sizes = [8, 32], strides = [1, 1]} : vector<8x128xf32> to vector<8x32xf32>
    %328 = vector.extract_strided_slice %325 {offsets = [0, 32], sizes = [8, 32], strides = [1, 1]} : vector<8x128xf32> to vector<8x32xf32>
    %329 = vector.extract_strided_slice %325 {offsets = [0, 64], sizes = [8, 32], strides = [1, 1]} : vector<8x128xf32> to vector<8x32xf32>
    %330 = vector.extract_strided_slice %326 {offsets = [0, 96], sizes = [8, 32], strides = [1, 1]} : vector<8x128xf32> to vector<8x32xf32>
    %331 = arith.mulf %328, %310 : vector<8x32xf32>
    %332 = arith.mulf %327, %330 : vector<8x32xf32>
    %333 = arith.addf %331, %332 : vector<8x32xf32>
    %334 = math.tanh %333 : vector<8x32xf32>
    %335 = arith.mulf %329, %334 : vector<8x32xf32>
    %336 = arith.truncf %335 : vector<8x32xf32> to vector<8x32xbf16>
    %cst_138 = arith.constant dense<0.000000e+00> : vector<8x128xf32>
    %337 = tpu.matmul %336, %251, %cst_138 {dimension_numbers = #tpu.dot_dimension_numbers<[1], [0], [0], [1], [0, 0, 1, 1], [], []>} : vector<8x32xbf16>, vector<32x128xbf16>, vector<8x128xf32> -> vector<8x128xf32>
    %338 = vector.broadcast %253 : vector<1x128xf32> to vector<8x128xf32>
    %339 = arith.addf %337, %338 : vector<8x128xf32>
    %c24_139 = arith.constant 24 : index
    %c0_140 = arith.constant 0 : index
    %340 = vector.load %arg7[%c24_139, %c0_140] : memref<64x128xf32, #tpu.memory_space<vmem>>, vector<8x128xf32>
    tpu.vector_store %arg7[%c24_139, %c0_140], %339 {strides = array<i32>} : memref<64x128xf32, #tpu.memory_space<vmem>>, vector<8x128xf32>,
    %c32_141 = arith.constant 32 : index
    %c0_142 = arith.constant 0 : index
    %341 = vector.load %arg8[%c32_141, %c0_142] : memref<64x128xf32, #tpu.memory_space<vmem>>, vector<8x128xf32>
    %cst_143 = arith.constant dense<0.000000e+00> : vector<8x128xf32>
    %342 = tpu.matmul %336, %249, %cst_143 {dimension_numbers = #tpu.dot_dimension_numbers<[1], [0], [0], [1], [0, 0, 1, 1], [], []>} : vector<8x32xbf16>, vector<32x128xbf16>, vector<8x128xf32> -> vector<8x128xf32>
    %343 = arith.addf %341, %342 : vector<8x128xf32>
    %344 = arith.negf %343 : vector<8x128xf32>
    %345 = math.exp %344 : vector<8x128xf32>
    %cst_144 = arith.constant 1.000000e+00 : f32
    %346 = vector.broadcast %cst_144 : f32 to vector<8x128xf32>
    %347 = arith.addf %346, %345 : vector<8x128xf32>
    %348 = arith.divf %346, %347 : vector<8x128xf32>
    %349 = math.tanh %343 : vector<8x128xf32>
    %350 = vector.extract_strided_slice %348 {offsets = [0, 0], sizes = [8, 32], strides = [1, 1]} : vector<8x128xf32> to vector<8x32xf32>
    %351 = vector.extract_strided_slice %348 {offsets = [0, 32], sizes = [8, 32], strides = [1, 1]} : vector<8x128xf32> to vector<8x32xf32>
    %352 = vector.extract_strided_slice %348 {offsets = [0, 64], sizes = [8, 32], strides = [1, 1]} : vector<8x128xf32> to vector<8x32xf32>
    %353 = vector.extract_strided_slice %349 {offsets = [0, 96], sizes = [8, 32], strides = [1, 1]} : vector<8x128xf32> to vector<8x32xf32>
    %354 = arith.mulf %351, %333 : vector<8x32xf32>
    %355 = arith.mulf %350, %353 : vector<8x32xf32>
    %356 = arith.addf %354, %355 : vector<8x32xf32>
    %357 = math.tanh %356 : vector<8x32xf32>
    %358 = arith.mulf %352, %357 : vector<8x32xf32>
    %359 = arith.truncf %358 : vector<8x32xf32> to vector<8x32xbf16>
    %cst_145 = arith.constant dense<0.000000e+00> : vector<8x128xf32>
    %360 = tpu.matmul %359, %251, %cst_145 {dimension_numbers = #tpu.dot_dimension_numbers<[1], [0], [0], [1], [0, 0, 1, 1], [], []>} : vector<8x32xbf16>, vector<32x128xbf16>, vector<8x128xf32> -> vector<8x128xf32>
    %361 = vector.broadcast %253 : vector<1x128xf32> to vector<8x128xf32>
    %362 = arith.addf %360, %361 : vector<8x128xf32>
    %c32_146 = arith.constant 32 : index
    %c0_147 = arith.constant 0 : index
    %363 = vector.load %arg7[%c32_146, %c0_147] : memref<64x128xf32, #tpu.memory_space<vmem>>, vector<8x128xf32>
    tpu.vector_store %arg7[%c32_146, %c0_147], %362 {strides = array<i32>} : memref<64x128xf32, #tpu.memory_space<vmem>>, vector<8x128xf32>,
    %c40_148 = arith.constant 40 : index
    %c0_149 = arith.constant 0 : index
    %364 = vector.load %arg8[%c40_148, %c0_149] : memref<64x128xf32, #tpu.memory_space<vmem>>, vector<8x128xf32>
    %cst_150 = arith.constant dense<0.000000e+00> : vector<8x128xf32>
    %365 = tpu.matmul %359, %249, %cst_150 {dimension_numbers = #tpu.dot_dimension_numbers<[1], [0], [0], [1], [0, 0, 1, 1], [], []>} : vector<8x32xbf16>, vector<32x128xbf16>, vector<8x128xf32> -> vector<8x128xf32>
    %366 = arith.addf %364, %365 : vector<8x128xf32>
    %367 = arith.negf %366 : vector<8x128xf32>
    %368 = math.exp %367 : vector<8x128xf32>
    %cst_151 = arith.constant 1.000000e+00 : f32
    %369 = vector.broadcast %cst_151 : f32 to vector<8x128xf32>
    %370 = arith.addf %369, %368 : vector<8x128xf32>
    %371 = arith.divf %369, %370 : vector<8x128xf32>
    %372 = math.tanh %366 : vector<8x128xf32>
    %373 = vector.extract_strided_slice %371 {offsets = [0, 0], sizes = [8, 32], strides = [1, 1]} : vector<8x128xf32> to vector<8x32xf32>
    %374 = vector.extract_strided_slice %371 {offsets = [0, 32], sizes = [8, 32], strides = [1, 1]} : vector<8x128xf32> to vector<8x32xf32>
    %375 = vector.extract_strided_slice %371 {offsets = [0, 64], sizes = [8, 32], strides = [1, 1]} : vector<8x128xf32> to vector<8x32xf32>
    %376 = vector.extract_strided_slice %372 {offsets = [0, 96], sizes = [8, 32], strides = [1, 1]} : vector<8x128xf32> to vector<8x32xf32>
    %377 = arith.mulf %374, %356 : vector<8x32xf32>
    %378 = arith.mulf %373, %376 : vector<8x32xf32>
    %379 = arith.addf %377, %378 : vector<8x32xf32>
    %380 = math.tanh %379 : vector<8x32xf32>
    %381 = arith.mulf %375, %380 : vector<8x32xf32>
    %382 = arith.truncf %381 : vector<8x32xf32> to vector<8x32xbf16>
    %cst_152 = arith.constant dense<0.000000e+00> : vector<8x128xf32>
    %383 = tpu.matmul %382, %251, %cst_152 {dimension_numbers = #tpu.dot_dimension_numbers<[1], [0], [0], [1], [0, 0, 1, 1], [], []>} : vector<8x32xbf16>, vector<32x128xbf16>, vector<8x128xf32> -> vector<8x128xf32>
    %384 = vector.broadcast %253 : vector<1x128xf32> to vector<8x128xf32>
    %385 = arith.addf %383, %384 : vector<8x128xf32>
    %c40_153 = arith.constant 40 : index
    %c0_154 = arith.constant 0 : index
    %386 = vector.load %arg7[%c40_153, %c0_154] : memref<64x128xf32, #tpu.memory_space<vmem>>, vector<8x128xf32>
    tpu.vector_store %arg7[%c40_153, %c0_154], %385 {strides = array<i32>} : memref<64x128xf32, #tpu.memory_space<vmem>>, vector<8x128xf32>,
    %c48_155 = arith.constant 48 : index
    %c0_156 = arith.constant 0 : index
    %387 = vector.load %arg8[%c48_155, %c0_156] : memref<64x128xf32, #tpu.memory_space<vmem>>, vector<8x128xf32>
    %cst_157 = arith.constant dense<0.000000e+00> : vector<8x128xf32>
    %388 = tpu.matmul %382, %249, %cst_157 {dimension_numbers = #tpu.dot_dimension_numbers<[1], [0], [0], [1], [0, 0, 1, 1], [], []>} : vector<8x32xbf16>, vector<32x128xbf16>, vector<8x128xf32> -> vector<8x128xf32>
    %389 = arith.addf %387, %388 : vector<8x128xf32>
    %390 = arith.negf %389 : vector<8x128xf32>
    %391 = math.exp %390 : vector<8x128xf32>
    %cst_158 = arith.constant 1.000000e+00 : f32
    %392 = vector.broadcast %cst_158 : f32 to vector<8x128xf32>
    %393 = arith.addf %392, %391 : vector<8x128xf32>
    %394 = arith.divf %392, %393 : vector<8x128xf32>
    %395 = math.tanh %389 : vector<8x128xf32>
    %396 = vector.extract_strided_slice %394 {offsets = [0, 0], sizes = [8, 32], strides = [1, 1]} : vector<8x128xf32> to vector<8x32xf32>
    %397 = vector.extract_strided_slice %394 {offsets = [0, 32], sizes = [8, 32], strides = [1, 1]} : vector<8x128xf32> to vector<8x32xf32>
    %398 = vector.extract_strided_slice %394 {offsets = [0, 64], sizes = [8, 32], strides = [1, 1]} : vector<8x128xf32> to vector<8x32xf32>
    %399 = vector.extract_strided_slice %395 {offsets = [0, 96], sizes = [8, 32], strides = [1, 1]} : vector<8x128xf32> to vector<8x32xf32>
    %400 = arith.mulf %397, %379 : vector<8x32xf32>
    %401 = arith.mulf %396, %399 : vector<8x32xf32>
    %402 = arith.addf %400, %401 : vector<8x32xf32>
    %403 = math.tanh %402 : vector<8x32xf32>
    %404 = arith.mulf %398, %403 : vector<8x32xf32>
    %405 = arith.truncf %404 : vector<8x32xf32> to vector<8x32xbf16>
    %cst_159 = arith.constant dense<0.000000e+00> : vector<8x128xf32>
    %406 = tpu.matmul %405, %251, %cst_159 {dimension_numbers = #tpu.dot_dimension_numbers<[1], [0], [0], [1], [0, 0, 1, 1], [], []>} : vector<8x32xbf16>, vector<32x128xbf16>, vector<8x128xf32> -> vector<8x128xf32>
    %407 = vector.broadcast %253 : vector<1x128xf32> to vector<8x128xf32>
    %408 = arith.addf %406, %407 : vector<8x128xf32>
    %c48_160 = arith.constant 48 : index
    %c0_161 = arith.constant 0 : index
    %409 = vector.load %arg7[%c48_160, %c0_161] : memref<64x128xf32, #tpu.memory_space<vmem>>, vector<8x128xf32>
    tpu.vector_store %arg7[%c48_160, %c0_161], %408 {strides = array<i32>} : memref<64x128xf32, #tpu.memory_space<vmem>>, vector<8x128xf32>,
    %c56_162 = arith.constant 56 : index
    %c0_163 = arith.constant 0 : index
    %410 = vector.load %arg8[%c56_162, %c0_163] : memref<64x128xf32, #tpu.memory_space<vmem>>, vector<8x128xf32>
    %cst_164 = arith.constant dense<0.000000e+00> : vector<8x128xf32>
    %411 = tpu.matmul %405, %249, %cst_164 {dimension_numbers = #tpu.dot_dimension_numbers<[1], [0], [0], [1], [0, 0, 1, 1], [], []>} : vector<8x32xbf16>, vector<32x128xbf16>, vector<8x128xf32> -> vector<8x128xf32>
    %412 = arith.addf %410, %411 : vector<8x128xf32>
    %413 = arith.negf %412 : vector<8x128xf32>
    %414 = math.exp %413 : vector<8x128xf32>
    %cst_165 = arith.constant 1.000000e+00 : f32
    %415 = vector.broadcast %cst_165 : f32 to vector<8x128xf32>
    %416 = arith.addf %415, %414 : vector<8x128xf32>
    %417 = arith.divf %415, %416 : vector<8x128xf32>
    %418 = math.tanh %412 : vector<8x128xf32>
    %419 = vector.extract_strided_slice %417 {offsets = [0, 0], sizes = [8, 32], strides = [1, 1]} : vector<8x128xf32> to vector<8x32xf32>
    %420 = vector.extract_strided_slice %417 {offsets = [0, 32], sizes = [8, 32], strides = [1, 1]} : vector<8x128xf32> to vector<8x32xf32>
    %421 = vector.extract_strided_slice %417 {offsets = [0, 64], sizes = [8, 32], strides = [1, 1]} : vector<8x128xf32> to vector<8x32xf32>
    %422 = vector.extract_strided_slice %418 {offsets = [0, 96], sizes = [8, 32], strides = [1, 1]} : vector<8x128xf32> to vector<8x32xf32>
    %423 = arith.mulf %420, %402 : vector<8x32xf32>
    %424 = arith.mulf %419, %422 : vector<8x32xf32>
    %425 = arith.addf %423, %424 : vector<8x32xf32>
    %426 = math.tanh %425 : vector<8x32xf32>
    %427 = arith.mulf %421, %426 : vector<8x32xf32>
    %428 = arith.truncf %427 : vector<8x32xf32> to vector<8x32xbf16>
    %cst_166 = arith.constant dense<0.000000e+00> : vector<8x128xf32>
    %429 = tpu.matmul %428, %251, %cst_166 {dimension_numbers = #tpu.dot_dimension_numbers<[1], [0], [0], [1], [0, 0, 1, 1], [], []>} : vector<8x32xbf16>, vector<32x128xbf16>, vector<8x128xf32> -> vector<8x128xf32>
    %430 = vector.broadcast %253 : vector<1x128xf32> to vector<8x128xf32>
    %431 = arith.addf %429, %430 : vector<8x128xf32>
    %c56_167 = arith.constant 56 : index
    %c0_168 = arith.constant 0 : index
    %432 = vector.load %arg7[%c56_167, %c0_168] : memref<64x128xf32, #tpu.memory_space<vmem>>, vector<8x128xf32>
    tpu.vector_store %arg7[%c56_167, %c0_168], %431 {strides = array<i32>} : memref<64x128xf32, #tpu.memory_space<vmem>>, vector<8x128xf32>,
    %c2_169 = arith.constant 2 : index
    %c0_170 = arith.constant 0 : index
    %c0_171 = arith.constant 0 : index
    %433 = vector.load %arg2[%c2_169, %c0_170, %c0_171] : memref<3x32x128xbf16, #tpu.memory_space<vmem>>, vector<1x32x128xbf16>
    %434 = vector.shape_cast %433 : vector<1x32x128xbf16> to vector<32x128xbf16>
    %c0_172 = arith.constant 0 : index
    %c0_173 = arith.constant 0 : index
    %435 = vector.load %arg7[%c0_172, %c0_173] : memref<64x128xf32, #tpu.memory_space<vmem>>, vector<8x128xf32>
    %436 = arith.negf %435 : vector<8x128xf32>
    %437 = math.exp %436 : vector<8x128xf32>
    %cst_174 = arith.constant 1.000000e+00 : f32
    %438 = vector.broadcast %cst_174 : f32 to vector<8x128xf32>
    %439 = arith.addf %438, %437 : vector<8x128xf32>
    %440 = arith.divf %438, %439 : vector<8x128xf32>
    %441 = math.tanh %435 : vector<8x128xf32>
    %442 = vector.extract_strided_slice %440 {offsets = [0, 0], sizes = [8, 32], strides = [1, 1]} : vector<8x128xf32> to vector<8x32xf32>
    %443 = vector.extract_strided_slice %440 {offsets = [0, 64], sizes = [8, 32], strides = [1, 1]} : vector<8x128xf32> to vector<8x32xf32>
    %444 = vector.extract_strided_slice %441 {offsets = [0, 96], sizes = [8, 32], strides = [1, 1]} : vector<8x128xf32> to vector<8x32xf32>
    %445 = arith.mulf %442, %444 : vector<8x32xf32>
    %446 = math.tanh %445 : vector<8x32xf32>
    %447 = arith.mulf %443, %446 : vector<8x32xf32>
    %448 = arith.truncf %447 : vector<8x32xf32> to vector<8x32xbf16>
    %c8_175 = arith.constant 8 : index
    %c0_176 = arith.constant 0 : index
    %449 = vector.load %arg7[%c8_175, %c0_176] : memref<64x128xf32, #tpu.memory_space<vmem>>, vector<8x128xf32>
    %cst_177 = arith.constant dense<0.000000e+00> : vector<8x128xf32>
    %450 = tpu.matmul %448, %434, %cst_177 {dimension_numbers = #tpu.dot_dimension_numbers<[1], [0], [0], [1], [0, 0, 1, 1], [], []>} : vector<8x32xbf16>, vector<32x128xbf16>, vector<8x128xf32> -> vector<8x128xf32>
    %451 = arith.addf %449, %450 : vector<8x128xf32>
    %452 = arith.negf %451 : vector<8x128xf32>
    %453 = math.exp %452 : vector<8x128xf32>
    %cst_178 = arith.constant 1.000000e+00 : f32
    %454 = vector.broadcast %cst_178 : f32 to vector<8x128xf32>
    %455 = arith.addf %454, %453 : vector<8x128xf32>
    %456 = arith.divf %454, %455 : vector<8x128xf32>
    %457 = math.tanh %451 : vector<8x128xf32>
    %458 = vector.extract_strided_slice %456 {offsets = [0, 0], sizes = [8, 32], strides = [1, 1]} : vector<8x128xf32> to vector<8x32xf32>
    %459 = vector.extract_strided_slice %456 {offsets = [0, 32], sizes = [8, 32], strides = [1, 1]} : vector<8x128xf32> to vector<8x32xf32>
    %460 = vector.extract_strided_slice %456 {offsets = [0, 64], sizes = [8, 32], strides = [1, 1]} : vector<8x128xf32> to vector<8x32xf32>
    %461 = vector.extract_strided_slice %457 {offsets = [0, 96], sizes = [8, 32], strides = [1, 1]} : vector<8x128xf32> to vector<8x32xf32>
    %462 = arith.mulf %459, %445 : vector<8x32xf32>
    %463 = arith.mulf %458, %461 : vector<8x32xf32>
    %464 = arith.addf %462, %463 : vector<8x32xf32>
    %465 = math.tanh %464 : vector<8x32xf32>
    %466 = arith.mulf %460, %465 : vector<8x32xf32>
    %467 = arith.truncf %466 : vector<8x32xf32> to vector<8x32xbf16>
    %c16_179 = arith.constant 16 : index
    %c0_180 = arith.constant 0 : index
    %468 = vector.load %arg7[%c16_179, %c0_180] : memref<64x128xf32, #tpu.memory_space<vmem>>, vector<8x128xf32>
    %cst_181 = arith.constant dense<0.000000e+00> : vector<8x128xf32>
    %469 = tpu.matmul %467, %434, %cst_181 {dimension_numbers = #tpu.dot_dimension_numbers<[1], [0], [0], [1], [0, 0, 1, 1], [], []>} : vector<8x32xbf16>, vector<32x128xbf16>, vector<8x128xf32> -> vector<8x128xf32>
    %470 = arith.addf %468, %469 : vector<8x128xf32>
    %471 = arith.negf %470 : vector<8x128xf32>
    %472 = math.exp %471 : vector<8x128xf32>
    %cst_182 = arith.constant 1.000000e+00 : f32
    %473 = vector.broadcast %cst_182 : f32 to vector<8x128xf32>
    %474 = arith.addf %473, %472 : vector<8x128xf32>
    %475 = arith.divf %473, %474 : vector<8x128xf32>
    %476 = math.tanh %470 : vector<8x128xf32>
    %477 = vector.extract_strided_slice %475 {offsets = [0, 0], sizes = [8, 32], strides = [1, 1]} : vector<8x128xf32> to vector<8x32xf32>
    %478 = vector.extract_strided_slice %475 {offsets = [0, 32], sizes = [8, 32], strides = [1, 1]} : vector<8x128xf32> to vector<8x32xf32>
    %479 = vector.extract_strided_slice %475 {offsets = [0, 64], sizes = [8, 32], strides = [1, 1]} : vector<8x128xf32> to vector<8x32xf32>
    %480 = vector.extract_strided_slice %476 {offsets = [0, 96], sizes = [8, 32], strides = [1, 1]} : vector<8x128xf32> to vector<8x32xf32>
    %481 = arith.mulf %478, %464 : vector<8x32xf32>
    %482 = arith.mulf %477, %480 : vector<8x32xf32>
    %483 = arith.addf %481, %482 : vector<8x32xf32>
    %484 = math.tanh %483 : vector<8x32xf32>
    %485 = arith.mulf %479, %484 : vector<8x32xf32>
    %486 = arith.truncf %485 : vector<8x32xf32> to vector<8x32xbf16>
    %c24_183 = arith.constant 24 : index
    %c0_184 = arith.constant 0 : index
    %487 = vector.load %arg7[%c24_183, %c0_184] : memref<64x128xf32, #tpu.memory_space<vmem>>, vector<8x128xf32>
    %cst_185 = arith.constant dense<0.000000e+00> : vector<8x128xf32>
    %488 = tpu.matmul %486, %434, %cst_185 {dimension_numbers = #tpu.dot_dimension_numbers<[1], [0], [0], [1], [0, 0, 1, 1], [], []>} : vector<8x32xbf16>, vector<32x128xbf16>, vector<8x128xf32> -> vector<8x128xf32>
    %489 = arith.addf %487, %488 : vector<8x128xf32>
    %490 = arith.negf %489 : vector<8x128xf32>
    %491 = math.exp %490 : vector<8x128xf32>
    %cst_186 = arith.constant 1.000000e+00 : f32
    %492 = vector.broadcast %cst_186 : f32 to vector<8x128xf32>
    %493 = arith.addf %492, %491 : vector<8x128xf32>
    %494 = arith.divf %492, %493 : vector<8x128xf32>
    %495 = math.tanh %489 : vector<8x128xf32>
    %496 = vector.extract_strided_slice %494 {offsets = [0, 0], sizes = [8, 32], strides = [1, 1]} : vector<8x128xf32> to vector<8x32xf32>
    %497 = vector.extract_strided_slice %494 {offsets = [0, 32], sizes = [8, 32], strides = [1, 1]} : vector<8x128xf32> to vector<8x32xf32>
    %498 = vector.extract_strided_slice %494 {offsets = [0, 64], sizes = [8, 32], strides = [1, 1]} : vector<8x128xf32> to vector<8x32xf32>
    %499 = vector.extract_strided_slice %495 {offsets = [0, 96], sizes = [8, 32], strides = [1, 1]} : vector<8x128xf32> to vector<8x32xf32>
    %500 = arith.mulf %497, %483 : vector<8x32xf32>
    %501 = arith.mulf %496, %499 : vector<8x32xf32>
    %502 = arith.addf %500, %501 : vector<8x32xf32>
    %503 = math.tanh %502 : vector<8x32xf32>
    %504 = arith.mulf %498, %503 : vector<8x32xf32>
    %505 = arith.truncf %504 : vector<8x32xf32> to vector<8x32xbf16>
    %c32_187 = arith.constant 32 : index
    %c0_188 = arith.constant 0 : index
    %506 = vector.load %arg7[%c32_187, %c0_188] : memref<64x128xf32, #tpu.memory_space<vmem>>, vector<8x128xf32>
    %cst_189 = arith.constant dense<0.000000e+00> : vector<8x128xf32>
    %507 = tpu.matmul %505, %434, %cst_189 {dimension_numbers = #tpu.dot_dimension_numbers<[1], [0], [0], [1], [0, 0, 1, 1], [], []>} : vector<8x32xbf16>, vector<32x128xbf16>, vector<8x128xf32> -> vector<8x128xf32>
    %508 = arith.addf %506, %507 : vector<8x128xf32>
    %509 = arith.negf %508 : vector<8x128xf32>
    %510 = math.exp %509 : vector<8x128xf32>
    %cst_190 = arith.constant 1.000000e+00 : f32
    %511 = vector.broadcast %cst_190 : f32 to vector<8x128xf32>
    %512 = arith.addf %511, %510 : vector<8x128xf32>
    %513 = arith.divf %511, %512 : vector<8x128xf32>
    %514 = math.tanh %508 : vector<8x128xf32>
    %515 = vector.extract_strided_slice %513 {offsets = [0, 0], sizes = [8, 32], strides = [1, 1]} : vector<8x128xf32> to vector<8x32xf32>
    %516 = vector.extract_strided_slice %513 {offsets = [0, 32], sizes = [8, 32], strides = [1, 1]} : vector<8x128xf32> to vector<8x32xf32>
    %517 = vector.extract_strided_slice %513 {offsets = [0, 64], sizes = [8, 32], strides = [1, 1]} : vector<8x128xf32> to vector<8x32xf32>
    %518 = vector.extract_strided_slice %514 {offsets = [0, 96], sizes = [8, 32], strides = [1, 1]} : vector<8x128xf32> to vector<8x32xf32>
    %519 = arith.mulf %516, %502 : vector<8x32xf32>
    %520 = arith.mulf %515, %518 : vector<8x32xf32>
    %521 = arith.addf %519, %520 : vector<8x32xf32>
    %522 = math.tanh %521 : vector<8x32xf32>
    %523 = arith.mulf %517, %522 : vector<8x32xf32>
    %524 = arith.truncf %523 : vector<8x32xf32> to vector<8x32xbf16>
    %c40_191 = arith.constant 40 : index
    %c0_192 = arith.constant 0 : index
    %525 = vector.load %arg7[%c40_191, %c0_192] : memref<64x128xf32, #tpu.memory_space<vmem>>, vector<8x128xf32>
    %cst_193 = arith.constant dense<0.000000e+00> : vector<8x128xf32>
    %526 = tpu.matmul %524, %434, %cst_193 {dimension_numbers = #tpu.dot_dimension_numbers<[1], [0], [0], [1], [0, 0, 1, 1], [], []>} : vector<8x32xbf16>, vector<32x128xbf16>, vector<8x128xf32> -> vector<8x128xf32>
    %527 = arith.addf %525, %526 : vector<8x128xf32>
    %528 = arith.negf %527 : vector<8x128xf32>
    %529 = math.exp %528 : vector<8x128xf32>
    %cst_194 = arith.constant 1.000000e+00 : f32
    %530 = vector.broadcast %cst_194 : f32 to vector<8x128xf32>
    %531 = arith.addf %530, %529 : vector<8x128xf32>
    %532 = arith.divf %530, %531 : vector<8x128xf32>
    %533 = math.tanh %527 : vector<8x128xf32>
    %534 = vector.extract_strided_slice %532 {offsets = [0, 0], sizes = [8, 32], strides = [1, 1]} : vector<8x128xf32> to vector<8x32xf32>
    %535 = vector.extract_strided_slice %532 {offsets = [0, 32], sizes = [8, 32], strides = [1, 1]} : vector<8x128xf32> to vector<8x32xf32>
    %536 = vector.extract_strided_slice %532 {offsets = [0, 64], sizes = [8, 32], strides = [1, 1]} : vector<8x128xf32> to vector<8x32xf32>
    %537 = vector.extract_strided_slice %533 {offsets = [0, 96], sizes = [8, 32], strides = [1, 1]} : vector<8x128xf32> to vector<8x32xf32>
    %538 = arith.mulf %535, %521 : vector<8x32xf32>
    %539 = arith.mulf %534, %537 : vector<8x32xf32>
    %540 = arith.addf %538, %539 : vector<8x32xf32>
    %541 = math.tanh %540 : vector<8x32xf32>
    %542 = arith.mulf %536, %541 : vector<8x32xf32>
    %543 = arith.truncf %542 : vector<8x32xf32> to vector<8x32xbf16>
    %c48_195 = arith.constant 48 : index
    %c0_196 = arith.constant 0 : index
    %544 = vector.load %arg7[%c48_195, %c0_196] : memref<64x128xf32, #tpu.memory_space<vmem>>, vector<8x128xf32>
    %cst_197 = arith.constant dense<0.000000e+00> : vector<8x128xf32>
    %545 = tpu.matmul %543, %434, %cst_197 {dimension_numbers = #tpu.dot_dimension_numbers<[1], [0], [0], [1], [0, 0, 1, 1], [], []>} : vector<8x32xbf16>, vector<32x128xbf16>, vector<8x128xf32> -> vector<8x128xf32>
    %546 = arith.addf %544, %545 : vector<8x128xf32>
    %547 = arith.negf %546 : vector<8x128xf32>
    %548 = math.exp %547 : vector<8x128xf32>
    %cst_198 = arith.constant 1.000000e+00 : f32
    %549 = vector.broadcast %cst_198 : f32 to vector<8x128xf32>
    %550 = arith.addf %549, %548 : vector<8x128xf32>
    %551 = arith.divf %549, %550 : vector<8x128xf32>
    %552 = math.tanh %546 : vector<8x128xf32>
    %553 = vector.extract_strided_slice %551 {offsets = [0, 0], sizes = [8, 32], strides = [1, 1]} : vector<8x128xf32> to vector<8x32xf32>
    %554 = vector.extract_strided_slice %551 {offsets = [0, 32], sizes = [8, 32], strides = [1, 1]} : vector<8x128xf32> to vector<8x32xf32>
    %555 = vector.extract_strided_slice %551 {offsets = [0, 64], sizes = [8, 32], strides = [1, 1]} : vector<8x128xf32> to vector<8x32xf32>
    %556 = vector.extract_strided_slice %552 {offsets = [0, 96], sizes = [8, 32], strides = [1, 1]} : vector<8x128xf32> to vector<8x32xf32>
    %557 = arith.mulf %554, %540 : vector<8x32xf32>
    %558 = arith.mulf %553, %556 : vector<8x32xf32>
    %559 = arith.addf %557, %558 : vector<8x32xf32>
    %560 = math.tanh %559 : vector<8x32xf32>
    %561 = arith.mulf %555, %560 : vector<8x32xf32>
    %562 = arith.truncf %561 : vector<8x32xf32> to vector<8x32xbf16>
    %c56_199 = arith.constant 56 : index
    %c0_200 = arith.constant 0 : index
    %563 = vector.load %arg7[%c56_199, %c0_200] : memref<64x128xf32, #tpu.memory_space<vmem>>, vector<8x128xf32>
    %cst_201 = arith.constant dense<0.000000e+00> : vector<8x128xf32>
    %564 = tpu.matmul %562, %434, %cst_201 {dimension_numbers = #tpu.dot_dimension_numbers<[1], [0], [0], [1], [0, 0, 1, 1], [], []>} : vector<8x32xbf16>, vector<32x128xbf16>, vector<8x128xf32> -> vector<8x128xf32>
    %565 = arith.addf %563, %564 : vector<8x128xf32>
    %566 = arith.negf %565 : vector<8x128xf32>
    %567 = math.exp %566 : vector<8x128xf32>
    %cst_202 = arith.constant 1.000000e+00 : f32
    %568 = vector.broadcast %cst_202 : f32 to vector<8x128xf32>
    %569 = arith.addf %568, %567 : vector<8x128xf32>
    %570 = arith.divf %568, %569 : vector<8x128xf32>
    %571 = math.tanh %565 : vector<8x128xf32>
    %572 = vector.extract_strided_slice %570 {offsets = [0, 0], sizes = [8, 32], strides = [1, 1]} : vector<8x128xf32> to vector<8x32xf32>
    %573 = vector.extract_strided_slice %570 {offsets = [0, 32], sizes = [8, 32], strides = [1, 1]} : vector<8x128xf32> to vector<8x32xf32>
    %574 = vector.extract_strided_slice %570 {offsets = [0, 64], sizes = [8, 32], strides = [1, 1]} : vector<8x128xf32> to vector<8x32xf32>
    %575 = vector.extract_strided_slice %571 {offsets = [0, 96], sizes = [8, 32], strides = [1, 1]} : vector<8x128xf32> to vector<8x32xf32>
    %576 = arith.mulf %573, %559 : vector<8x32xf32>
    %577 = arith.mulf %572, %575 : vector<8x32xf32>
    %578 = arith.addf %576, %577 : vector<8x32xf32>
    %579 = math.tanh %578 : vector<8x32xf32>
    %580 = arith.mulf %574, %579 : vector<8x32xf32>
    %c0_203 = arith.constant 0 : index
    %c0_204 = arith.constant 0 : index
    %581 = vector.load %arg4[%c0_203, %c0_204] : memref<32x8xf32, #tpu.memory_space<vmem>>, vector<32x8xf32>
    %cst_205 = arith.constant dense<0.000000e+00> : vector<8x8xf32>
    %582 = tpu.matmul %580, %581, %cst_205 {dimension_numbers = #tpu.dot_dimension_numbers<[1], [0], [0], [1], [0, 0, 1, 1], [], []>} : vector<8x32xf32>, vector<32x8xf32>, vector<8x8xf32> -> vector<8x8xf32>
    %c0_206 = arith.constant 0 : index
    %c0_207 = arith.constant 0 : index
    %583 = vector.load %arg5[%c0_206, %c0_207] : memref<1x8xf32, #tpu.memory_space<vmem>>, vector<1x8xf32>
    %584 = vector.broadcast %583 : vector<1x8xf32> to vector<8x8xf32>
    %585 = arith.addf %582, %584 : vector<8x8xf32>
    %586 = vector.extract_strided_slice %585 {offsets = [0, 0], sizes = [2, 8], strides = [1, 1]} : vector<8x8xf32> to vector<2x8xf32>
    %c0_208 = arith.constant 0 : index
    %c0_209 = arith.constant 0 : index
    %587 = vector.load %arg6[%c0_208, %c0_209] : memref<2x8xf32, #tpu.memory_space<vmem>>, vector<2x8xf32>
    tpu.vector_store %arg6[%c0_208, %c0_209], %586 {strides = array<i32>} : memref<2x8xf32, #tpu.memory_space<vmem>>, vector<2x8xf32>,
    return
  }
}

</mosaic_0001>

<llo_original>
// kernel: tpu_custom_call.1
$region0: #{tpu_custom_call.1}
  #allocation0 [shape = 'u32[]', space=smem, size = 0x4, offset = 0x4, fixed_abs, tag = 'smem constant byte address 0x4 - core index']
  #allocation1 [shape = 'u32[72,128]{1,0:T(1,128)}', space=vmem, size = 0x9000, scoped, tag = 'internal scratch']
  #allocation2 [shape = 'f32[64,128]{1,0:T(8,128)}', space=vmem, size = 0x8000, scoped, tag = 'scratch operand']
  #allocation3 [shape = 'f32[64,128]{1,0:T(8,128)}', space=vmem, size = 0x8000, scoped, tag = 'scratch operand']
  %s0 = inlined_call_operand.vmem [shape: f32[2,8,4], index: 0, kind: input, shape index: {}]
  %s1 = inlined_call_operand.vmem [shape: bf16[3,32,128], index: 1, kind: input, shape index: {}]
  %s2 = inlined_call_operand.hbm [shape: bf16[3,32,128], index: 2, kind: input, shape index: {}]
  %s3 = inlined_call_operand.vmem [shape: f32[3,1,128], index: 3, kind: input, shape index: {}]
  %s4 = inlined_call_operand.vmem [shape: f32[32,8], index: 4, kind: input, shape index: {}]
  %s5 = inlined_call_operand.vmem [shape: f32[1,8], index: 5, kind: input, shape index: {}]
  %s6 = inlined_call_operand.hbm [shape: f32[2,8], index: 6, kind: output, shape index: {}]
  %s7 = sld [smem:[#allocation0]]
  $region38: #{tpu_custom_call.1} parent=0
    _
  %s9 = ssub.s32 1, %s7
  %s10 = scalar_select 0, %s9, %s7
  $region1: #{tpu_custom_call.1} parent=0
    #allocation4 [shape = 'u8[24576]{0}', space=vmem, size = 0x6000, scoped, tag = 'input window, operand 2, single buffered']
    #allocation5 [shape = 's32[1]{0}', space=sflag, size = 0x4, scoped, tag = 'scoped memory for tpu_custom_call.1']
    #allocation6 [shape = 's32[1]{0}', space=sflag, size = 0x4, scoped, tag = 'scoped memory for tpu_custom_call.1']
    #allocation7 [shape = 'u8[1024]{0}', space=vmem, size = 0x400, scoped, tag = 'output window, operand 0, single buffered']
    %11 = vsyncpa [#allocation5], 0
    %12 = vsyncpa [#allocation6], 0
    // Predicated region
    $region2: #{tpu_custom_call.1} parent=1 // pred_check
      _
    $region3: #{tpu_custom_call.1} parent=1 // pred_check_branch
      %14 = sbr.rel (0) target = $region5
    $region4: #{tpu_custom_call.1} parent=1 // pred_region
      _
    $region5: #{tpu_custom_call.1} parent=1 // pred_fallthru
      _
    // Predicated region
    $region6: #{tpu_custom_call.1} parent=1 // pred_check
      _
    $region7: #{tpu_custom_call.1} parent=1 // pred_check_branch
      %16 = sbr.rel (0) target = $region9
    $region8: #{tpu_custom_call.1} parent=1 // pred_region
      _
    $region9: #{tpu_custom_call.1} parent=1 // pred_fallthru
      _
    // Predicated region
    $region10: #{tpu_custom_call.1} parent=1 // pred_check
      _
    $region11: #{tpu_custom_call.1} parent=1 // pred_check_branch
      %18 = sbr.rel (0) target = $region13
    $region12: #{tpu_custom_call.1} parent=1 // pred_region
      %20 = vsyncadd [#allocation5], 0
      %s21 = sshll.u32 %s2, 4
      %s22 = int_to_ptr.hbm [resolvable:$true] %s21
      %s23 = sshll.u32 [#allocation4], 4
      %s24 = int_to_ptr.vmem [resolvable:$true] %s23
      %29 = dma.hbm_to_vmem [thread:$0]  %s22, 768, %s24, [#allocation5], 64, 64, 4
    $region13: #{tpu_custom_call.1} parent=1 // pred_fallthru
      _
    // Predicated region
    $region14: #{tpu_custom_call.1} parent=1 // pred_check
      _
    $region15: #{tpu_custom_call.1} parent=1 // pred_check_branch
      %31 = sbr.rel (0) target = $region17
    $region16: #{tpu_custom_call.1} parent=1 // pred_region
      _
    $region17: #{tpu_custom_call.1} parent=1 // pred_fallthru
      _
    // Predicated region
    $region18: #{tpu_custom_call.1} parent=1 // pred_check
      _
    $region19: #{tpu_custom_call.1} parent=1 // pred_check_branch
      %33 = sbr.rel (0) target = $region21
    $region20: #{tpu_custom_call.1} parent=1 // pred_region
      _
    $region21: #{tpu_custom_call.1} parent=1 // pred_fallthru
      _
    // Predicated region
    $region22: #{tpu_custom_call.1} parent=1 // pred_check
      _
    $region23: #{tpu_custom_call.1} parent=1 // pred_check_branch
      %35 = sbr.rel (0) target = $region25
    $region24: #{tpu_custom_call.1} parent=1 // pred_region
      _
    $region25: #{tpu_custom_call.1} parent=1 // pred_fallthru
      _
    // Predicated region
    $region26: #{tpu_custom_call.1} parent=1 // pred_check
      _
    $region27: #{tpu_custom_call.1} parent=1 // pred_check_branch
      %37 = sbr.rel (0) target = $region29
    $region28: #{tpu_custom_call.1} parent=1 // pred_region
      %39 = dma.done [#allocation5], 768
    $region29: #{tpu_custom_call.1} parent=1 // pred_fallthru
      _
    %41 = vst [vmem:[#allocation2] sm:$0xff] 0.0
    %42 = vst [vmem:[#allocation2 + $0x8] sm:$0xff] 0.0
    %43 = vst [vmem:[#allocation2 + $0x10] sm:$0xff] 0.0
    %44 = vst [vmem:[#allocation2 + $0x18] sm:$0xff] 0.0
    %45 = vst [vmem:[#allocation2 + $0x20] sm:$0xff] 0.0
    %46 = vst [vmem:[#allocation2 + $0x28] sm:$0xff] 0.0
    %47 = vst [vmem:[#allocation2 + $0x30] sm:$0xff] 0.0
    %48 = vst [vmem:[#allocation2 + $0x38] sm:$0xff] 0.0
    %v49 = vld [vmem:[%s1] sm:$0xf]
    %v50 = vld [vmem:[%s3] sm:$0x1]
    %v51 = vld [vmem:[%s0] sm:$0x1]
    %v52 = vld [vmem:[%s0 + $0x8] sm:$0x1]
    %v53 = vpack.c.bf16 %v51, %v51
    %v54 = vpack.c.bf16 %v52, %v52
    %v56 = vperm.slane %v50, 0
    %v60 = vunpack.c.l.b16 %v53
    %v61 = vunpack.c.l.b16 %v54
    %v62 = vrot.slane %v61, 7
    %vm63 = vcmask 1041409
    %v64 = vsel %vm63, %v62, %v60
    %v65 = vpack.c.b16 %v64, %v64
    %vm66 = vcmask 31744
    %v68 = vsel %vm66, %v65, 0
    %vm70 = vcmask 1041408
    %v72 = vsel %vm70, %v49, 0
    %74 = vmatpush.bf16.msra.mxu0 0
    %75 = vmatpush.bf16.msra.mxu0 0
    %76 = vmatpush.bf16.msra.mxu0 0
    %77 = vmatpush.bf16.msra.mxu0 0
    %78 = vmatpush.bf16.msra.mxu0 0
    %79 = vmatpush.bf16.msra.mxu0 0
    %80 = vmatpush.bf16.msra.mxu0 0
    %81 = vmatpush.bf16.msra.mxu0 %v72
    %82 = vmatmul.bf16.gmra.mxu0 %v68
    %v83 = vpop.f32.mrf.mxu0
    %v84 = vadd.f32 %v56, %v83
    %v85 = vpop.f32.mrf.mxu0
    %86 = vdwg.mxu0
    %87 = vst [vmem:[#allocation2] sm:$0x3] %v84
    %v88 = vld [vmem:[%s0 + $0x1] sm:$0x1]
    %v89 = vld [vmem:[%s0 + $0x9] sm:$0x1]
    %v90 = vpack.c.bf16 %v88, %v88
    %v91 = vpack.c.bf16 %v89, %v89
    %v94 = vunpack.c.l.b16 %v90
    %v95 = vunpack.c.l.b16 %v91
    %v96 = vrot.slane %v95, 7
    %v97 = vsel %vm63, %v96, %v94
    %v98 = vpack.c.b16 %v97, %v97
    %v100 = vsel %vm66, %v98, 0
    %102 = vmatpush.bf16.msra.mxu0 0
    %103 = vmatpush.bf16.msra.mxu0 0
    %104 = vmatpush.bf16.msra.mxu0 0
    %105 = vmatpush.bf16.msra.mxu0 0
    %106 = vmatpush.bf16.msra.mxu0 0
    %107 = vmatpush.bf16.msra.mxu0 0
    %108 = vmatpush.bf16.msra.mxu0 0
    %109 = vmatpush.bf16.msra.mxu0 %v72
    %110 = vmatmul.bf16.gmra.mxu0 %v100
    %v111 = vpop.f32.mrf.mxu0
    %v112 = vadd.f32 %v56, %v111
    %v113 = vpop.f32.mrf.mxu0
    %114 = vdwg.mxu0
    %115 = vst [vmem:[#allocation2 + $0x8] sm:$0x3] %v112
    %v116 = vld [vmem:[%s0 + $0x2] sm:$0x1]
    %v117 = vld [vmem:[%s0 + $0xa] sm:$0x1]
    %v118 = vpack.c.bf16 %v116, %v116
    %v119 = vpack.c.bf16 %v117, %v117
    %v122 = vunpack.c.l.b16 %v118
    %v123 = vunpack.c.l.b16 %v119
    %v124 = vrot.slane %v123, 7
    %v125 = vsel %vm63, %v124, %v122
    %v126 = vpack.c.b16 %v125, %v125
    %v128 = vsel %vm66, %v126, 0
    %130 = vmatpush.bf16.msra.mxu0 0
    %131 = vmatpush.bf16.msra.mxu0 0
    %132 = vmatpush.bf16.msra.mxu0 0
    %133 = vmatpush.bf16.msra.mxu0 0
    %134 = vmatpush.bf16.msra.mxu0 0
    %135 = vmatpush.bf16.msra.mxu0 0
    %136 = vmatpush.bf16.msra.mxu0 0
    %137 = vmatpush.bf16.msra.mxu0 %v72
    %138 = vmatmul.bf16.gmra.mxu0 %v128
    %v139 = vpop.f32.mrf.mxu0
    %v140 = vadd.f32 %v56, %v139
    %v141 = vpop.f32.mrf.mxu0
    %142 = vdwg.mxu0
    %143 = vst [vmem:[#allocation2 + $0x10] sm:$0x3] %v140
    %v144 = vld [vmem:[%s0 + $0x3] sm:$0x1]
    %v145 = vld [vmem:[%s0 + $0xb] sm:$0x1]
    %v146 = vpack.c.bf16 %v144, %v144
    %v147 = vpack.c.bf16 %v145, %v145
    %v150 = vunpack.c.l.b16 %v146
    %v151 = vunpack.c.l.b16 %v147
    %v152 = vrot.slane %v151, 7
    %v153 = vsel %vm63, %v152, %v150
    %v154 = vpack.c.b16 %v153, %v153
    %v156 = vsel %vm66, %v154, 0
    %158 = vmatpush.bf16.msra.mxu0 0
    %159 = vmatpush.bf16.msra.mxu0 0
    %160 = vmatpush.bf16.msra.mxu0 0
    %161 = vmatpush.bf16.msra.mxu0 0
    %162 = vmatpush.bf16.msra.mxu0 0
    %163 = vmatpush.bf16.msra.mxu0 0
    %164 = vmatpush.bf16.msra.mxu0 0
    %165 = vmatpush.bf16.msra.mxu0 %v72
    %166 = vmatmul.bf16.gmra.mxu0 %v156
    %v167 = vpop.f32.mrf.mxu0
    %v168 = vadd.f32 %v56, %v167
    %v169 = vpop.f32.mrf.mxu0
    %170 = vdwg.mxu0
    %171 = vst [vmem:[#allocation2 + $0x18] sm:$0x3] %v168
    %v172 = vld [vmem:[%s0 + $0x4] sm:$0x1]
    %v173 = vld [vmem:[%s0 + $0xc] sm:$0x1]
    %v174 = vpack.c.bf16 %v172, %v172
    %v175 = vpack.c.bf16 %v173, %v173
    %v178 = vunpack.c.l.b16 %v174
    %v179 = vunpack.c.l.b16 %v175
    %v180 = vrot.slane %v179, 7
    %v181 = vsel %vm63, %v180, %v178
    %v182 = vpack.c.b16 %v181, %v181
    %v184 = vsel %vm66, %v182, 0
    %186 = vmatpush.bf16.msra.mxu0 0
    %187 = vmatpush.bf16.msra.mxu0 0
    %188 = vmatpush.bf16.msra.mxu0 0
    %189 = vmatpush.bf16.msra.mxu0 0
    %190 = vmatpush.bf16.msra.mxu0 0
    %191 = vmatpush.bf16.msra.mxu0 0
    %192 = vmatpush.bf16.msra.mxu0 0
    %193 = vmatpush.bf16.msra.mxu0 %v72
    %194 = vmatmul.bf16.gmra.mxu0 %v184
    %v195 = vpop.f32.mrf.mxu0
    %v196 = vadd.f32 %v56, %v195
    %v197 = vpop.f32.mrf.mxu0
    %198 = vdwg.mxu0
    %199 = vst [vmem:[#allocation2 + $0x20] sm:$0x3] %v196
    %v200 = vld [vmem:[%s0 + $0x5] sm:$0x1]
    %v201 = vld [vmem:[%s0 + $0xd] sm:$0x1]
    %v202 = vpack.c.bf16 %v200, %v200
    %v203 = vpack.c.bf16 %v201, %v201
    %v206 = vunpack.c.l.b16 %v202
    %v207 = vunpack.c.l.b16 %v203
    %v208 = vrot.slane %v207, 7
    %v209 = vsel %vm63, %v208, %v206
    %v210 = vpack.c.b16 %v209, %v209
    %v212 = vsel %vm66, %v210, 0
    %214 = vmatpush.bf16.msra.mxu0 0
    %215 = vmatpush.bf16.msra.mxu0 0
    %216 = vmatpush.bf16.msra.mxu0 0
    %217 = vmatpush.bf16.msra.mxu0 0
    %218 = vmatpush.bf16.msra.mxu0 0
    %219 = vmatpush.bf16.msra.mxu0 0
    %220 = vmatpush.bf16.msra.mxu0 0
    %221 = vmatpush.bf16.msra.mxu0 %v72
    %222 = vmatmul.bf16.gmra.mxu0 %v212
    %v223 = vpop.f32.mrf.mxu0
    %v224 = vadd.f32 %v56, %v223
    %v225 = vpop.f32.mrf.mxu0
    %226 = vdwg.mxu0
    %227 = vst [vmem:[#allocation2 + $0x28] sm:$0x3] %v224
    %v228 = vld [vmem:[%s0 + $0x6] sm:$0x1]
    %v229 = vld [vmem:[%s0 + $0xe] sm:$0x1]
    %v230 = vpack.c.bf16 %v228, %v228
    %v231 = vpack.c.bf16 %v229, %v229
    %v234 = vunpack.c.l.b16 %v230
    %v235 = vunpack.c.l.b16 %v231
    %v236 = vrot.slane %v235, 7
    %v237 = vsel %vm63, %v236, %v234
    %v238 = vpack.c.b16 %v237, %v237
    %v240 = vsel %vm66, %v238, 0
    %242 = vmatpush.bf16.msra.mxu0 0
    %243 = vmatpush.bf16.msra.mxu0 0
    %244 = vmatpush.bf16.msra.mxu0 0
    %245 = vmatpush.bf16.msra.mxu0 0
    %246 = vmatpush.bf16.msra.mxu0 0
    %247 = vmatpush.bf16.msra.mxu0 0
    %248 = vmatpush.bf16.msra.mxu0 0
    %249 = vmatpush.bf16.msra.mxu0 %v72
    %250 = vmatmul.bf16.gmra.mxu0 %v240
    %v251 = vpop.f32.mrf.mxu0
    %v252 = vadd.f32 %v56, %v251
    %v253 = vpop.f32.mrf.mxu0
    %254 = vdwg.mxu0
    %255 = vst [vmem:[#allocation2 + $0x30] sm:$0x3] %v252
    %v256 = vld [vmem:[%s0 + $0x7] sm:$0x1]
    %v257 = vld [vmem:[%s0 + $0xf] sm:$0x1]
    %v258 = vpack.c.bf16 %v256, %v256
    %v259 = vpack.c.bf16 %v257, %v257
    %v262 = vunpack.c.l.b16 %v258
    %v263 = vunpack.c.l.b16 %v259
    %v264 = vrot.slane %v263, 7
    %v265 = vsel %vm63, %v264, %v262
    %v266 = vpack.c.b16 %v265, %v265
    %v268 = vsel %vm66, %v266, 0
    %270 = vmatpush.bf16.msra.mxu0 0
    %271 = vmatpush.bf16.msra.mxu0 0
    %272 = vmatpush.bf16.msra.mxu0 0
    %273 = vmatpush.bf16.msra.mxu0 0
    %274 = vmatpush.bf16.msra.mxu0 0
    %275 = vmatpush.bf16.msra.mxu0 0
    %276 = vmatpush.bf16.msra.mxu0 0
    %277 = vmatpush.bf16.msra.mxu0 %v72
    %278 = vmatmul.bf16.gmra.mxu0 %v268
    %v279 = vpop.f32.mrf.mxu0
    %v280 = vadd.f32 %v56, %v279
    %v281 = vpop.f32.mrf.mxu0
    %282 = vdwg.mxu0
    %283 = vst [vmem:[#allocation2 + $0x38] sm:$0x3] %v280
    %v284 = vld [vmem:[#allocation4] sm:$0xf]
    %v285 = vld [vmem:[#allocation4 + $0x4] sm:$0xf]
    %v286 = vld [vmem:[#allocation4 + $0x8] sm:$0xf]
    %v287 = vld [vmem:[#allocation4 + $0xc] sm:$0xf]
    %s288 = scalar_lea.vmem %s1, 16
    %v289 = vld [vmem:[%s288] sm:$0xf]
    %v290 = vld [vmem:[%s288 + $0x4] sm:$0xf]
    %v291 = vld [vmem:[%s288 + $0x8] sm:$0xf]
    %v292 = vld [vmem:[%s288 + $0xc] sm:$0xf]
    %s293 = scalar_lea.vmem %s3, 1
    %v294 = vld [vmem:[%s293] sm:$0x1]
    %v295 = vld [vmem:[#allocation2] sm:$0xff]
    %v296 = vxor.u32 %v295, 2147483648
    %v297 = vmul.f32 %v296, 1.442695
    %v298 = vpow.pop %v297
    %v299 = vadd.f32 %v298, 1.0
    %v300 = vrcp.pop %v299
    %v301 = vmul.f32 %v299, %v300
    %v302 = vsub.f32 1.0, %v301
    %v303 = vmul.f32 %v300, %v302
    %v304 = vadd.f32 %v300, %v303
    %vm305 = vweird.f32 %v299
    %vm306 = vweird.f32 %v300
    %vm307 = vmor %vm305, %vm306
    %v308 = vsel %vm307, %v300, %v304
    %v309 = vand.u32 2147483647, %v299
    %vm310 = vcmp.eq.f32.partialorder %v309, 8.507059e+37
    %v311 = vand.u32 %v299, 2147483648
    %v312 = vor.u32 1.1754944e-38, %v311
    %v313 = vsel %vm310, %v312, %v308
    %v314 = vmul.f32 1.0, %v313
    %v315 = vtanh.pop %v295
    %317 = vrot.lane.b32.xlu0 %v315, 32
    %v318 = vpop.permute.xlu0 %317
    %v320 = vmul.f32 %v314, %v318
    %v321 = vtanh.pop %v320
    %323 = vrot.lane.b32.xlu0 %v321, 64
    %v324 = vpop.permute.xlu0 %323
    %v326 = vmul.f32 %v314, %v324
    %v327 = vpack.c.bf16 %v326, %v326
    %v329 = vperm.slane %v294, 0
    %332 = vrot.lane.b32.xlu0 %v327, 64
    %v333 = vpop.permute.xlu0 %332
    %v338 = vunpack.c.l.b16 %v289
    %v339 = vunpack.c.l.b16 %v290
    %v340 = vunpack.c.l.b16 %v291
    %v341 = vunpack.c.l.b16 %v292
    %v342 = vpack.c.b16 %v339, %v338
    %v343 = vpack.c.b16 %v341, %v340
    %vm346 = vcmask 261120
    %v348 = vsel %vm346, %v333, 0
    %350 = vmatpush.bf16.msra.mxu0 0
    %351 = vmatpush.bf16.msra.mxu0 0
    %352 = vmatpush.bf16.msra.mxu0 0
    %353 = vmatpush.bf16.msra.mxu0 0
    %354 = vmatpush.bf16.msra.mxu0 0
    %355 = vmatpush.bf16.msra.mxu0 0
    %356 = vmatpush.bf16.msra.mxu0 %v343
    %357 = vmatpush.bf16.msra.mxu0 %v342
    %358 = vmatmul.bf16.gmra.mxu0 %v348
    %v359 = vpop.f32.mrf.mxu0
    %v360 = vadd.f32 %v329, %v359
    %v361 = vpop.f32.mrf.mxu0
    %362 = vdwg.mxu0
    %363 = vst [vmem:[#allocation3] sm:$0xff] %v360
    %v364 = vld [vmem:[#allocation2 + $0x8] sm:$0xff]
    %v369 = vunpack.c.l.b16 %v284
    %v370 = vunpack.c.l.b16 %v285
    %v371 = vunpack.c.l.b16 %v286
    %v372 = vunpack.c.l.b16 %v287
    %v373 = vpack.c.b16 %v370, %v369
    %v374 = vpack.c.b16 %v372, %v371
    %377 = vmatpush.bf16.msra.mxu0 0
    %378 = vmatpush.bf16.msra.mxu0 0
    %379 = vmatpush.bf16.msra.mxu0 0
    %380 = vmatpush.bf16.msra.mxu0 0
    %381 = vmatpush.bf16.msra.mxu0 0
    %382 = vmatpush.bf16.msra.mxu0 0
    %383 = vmatpush.bf16.msra.mxu0 %v374
    %384 = vmatpush.bf16.msra.mxu0 %v373
    %385 = vmatmul.bf16.gmra.mxu0 %v348
    %v386 = vpop.f32.mrf.mxu0
    %v387 = vadd.f32 0.0, %v386
    %v388 = vpop.f32.mrf.mxu0
    %389 = vdwg.mxu0
    %v390 = vadd.f32 %v364, %v387
    %v391 = vxor.u32 %v390, 2147483648
    %v392 = vmul.f32 %v391, 1.442695
    %v393 = vpow.pop %v392
    %v394 = vadd.f32 %v393, 1.0
    %v395 = vrcp.pop %v394
    %v396 = vmul.f32 %v394, %v395
    %v397 = vsub.f32 1.0, %v396
    %v398 = vmul.f32 %v395, %v397
    %v399 = vadd.f32 %v395, %v398
    %vm400 = vweird.f32 %v394
    %vm401 = vweird.f32 %v395
    %vm402 = vmor %vm400, %vm401
    %v403 = vsel %vm402, %v395, %v399
    %v404 = vand.u32 2147483647, %v394
    %vm405 = vcmp.eq.f32.partialorder %v404, 8.507059e+37
    %v406 = vand.u32 %v394, 2147483648
    %v407 = vor.u32 1.1754944e-38, %v406
    %v408 = vsel %vm405, %v407, %v403
    %v409 = vmul.f32 1.0, %v408
    %v410 = vtanh.pop %v390
    %412 = vrot.lane.b32.xlu0 %v320, 32
    %v413 = vpop.permute.xlu0 %412
    %v415 = vmul.f32 %v409, %v413
    %417 = vrot.lane.b32.xlu0 %v410, 32
    %v418 = vpop.permute.xlu0 %417
    %v420 = vmul.f32 %v409, %v418
    %422 = vrot.lane.b32.xlu0 %v420, 32
    %v423 = vpop.permute.xlu0 %422
    %v425 = vadd.f32 %v415, %v423
    %v426 = vtanh.pop %v425
    %428 = vrot.lane.b32.xlu0 %v426, 32
    %v429 = vpop.permute.xlu0 %428
    %v431 = vmul.f32 %v409, %v429
    %v432 = vpack.c.bf16 %v431, %v431
    %434 = vrot.lane.b32.xlu0 %v432, 64
    %v435 = vpop.permute.xlu0 %434
    %v437 = vsel %vm346, %v435, 0
    %439 = vmatpush.bf16.msra.mxu0 0
    %440 = vmatpush.bf16.msra.mxu0 0
    %441 = vmatpush.bf16.msra.mxu0 0
    %442 = vmatpush.bf16.msra.mxu0 0
    %443 = vmatpush.bf16.msra.mxu0 0
    %444 = vmatpush.bf16.msra.mxu0 0
    %445 = vmatpush.bf16.msra.mxu0 %v343
    %446 = vmatpush.bf16.msra.mxu0 %v342
    %447 = vmatmul.bf16.gmra.mxu0 %v437
    %v448 = vpop.f32.mrf.mxu0
    %v449 = vadd.f32 %v329, %v448
    %v450 = vpop.f32.mrf.mxu0
    %451 = vdwg.mxu0
    %452 = vst [vmem:[#allocation3 + $0x8] sm:$0xff] %v449
    %v453 = vld [vmem:[#allocation2 + $0x10] sm:$0xff]
    %454 = vmatpush.bf16.msra.mxu0 0
    %455 = vmatpush.bf16.msra.mxu0 0
    %456 = vmatpush.bf16.msra.mxu0 0
    %457 = vmatpush.bf16.msra.mxu0 0
    %458 = vmatpush.bf16.msra.mxu0 0
    %459 = vmatpush.bf16.msra.mxu0 0
    %460 = vmatpush.bf16.msra.mxu0 %v374
    %461 = vmatpush.bf16.msra.mxu0 %v373
    %462 = vmatmul.bf16.gmra.mxu0 %v437
    %v463 = vpop.f32.mrf.mxu0
    %v464 = vadd.f32 0.0, %v463
    %v465 = vpop.f32.mrf.mxu0
    %466 = vdwg.mxu0
    %v467 = vadd.f32 %v453, %v464
    %v468 = vxor.u32 %v467, 2147483648
    %v469 = vmul.f32 %v468, 1.442695
    %v470 = vpow.pop %v469
    %v471 = vadd.f32 %v470, 1.0
    %v472 = vrcp.pop %v471
    %v473 = vmul.f32 %v471, %v472
    %v474 = vsub.f32 1.0, %v473
    %v475 = vmul.f32 %v472, %v474
    %v476 = vadd.f32 %v472, %v475
    %vm477 = vweird.f32 %v471
    %vm478 = vweird.f32 %v472
    %vm479 = vmor %vm477, %vm478
    %v480 = vsel %vm479, %v472, %v476
    %v481 = vand.u32 2147483647, %v471
    %vm482 = vcmp.eq.f32.partialorder %v481, 8.507059e+37
    %v483 = vand.u32 %v471, 2147483648
    %v484 = vor.u32 1.1754944e-38, %v483
    %v485 = vsel %vm482, %v484, %v480
    %v486 = vmul.f32 1.0, %v485
    %v487 = vtanh.pop %v467
    %v488 = vmul.f32 %v486, %v425
    %490 = vrot.lane.b32.xlu0 %v487, 32
    %v491 = vpop.permute.xlu0 %490
    %v493 = vmul.f32 %v486, %v491
    %495 = vrot.lane.b32.xlu0 %v493, 32
    %v496 = vpop.permute.xlu0 %495
    %v498 = vadd.f32 %v488, %v496
    %v499 = vtanh.pop %v498
    %501 = vrot.lane.b32.xlu0 %v499, 32
    %v502 = vpop.permute.xlu0 %501
    %v504 = vmul.f32 %v486, %v502
    %v505 = vpack.c.bf16 %v504, %v504
    %507 = vrot.lane.b32.xlu0 %v505, 64
    %v508 = vpop.permute.xlu0 %507
    %v510 = vsel %vm346, %v508, 0
    %512 = vmatpush.bf16.msra.mxu0 0
    %513 = vmatpush.bf16.msra.mxu0 0
    %514 = vmatpush.bf16.msra.mxu0 0
    %515 = vmatpush.bf16.msra.mxu0 0
    %516 = vmatpush.bf16.msra.mxu0 0
    %517 = vmatpush.bf16.msra.mxu0 0
    %518 = vmatpush.bf16.msra.mxu0 %v343
    %519 = vmatpush.bf16.msra.mxu0 %v342
    %520 = vmatmul.bf16.gmra.mxu0 %v510
    %v521 = vpop.f32.mrf.mxu0
    %v522 = vadd.f32 %v329, %v521
    %v523 = vpop.f32.mrf.mxu0
    %524 = vdwg.mxu0
    %525 = vst [vmem:[#allocation3 + $0x10] sm:$0xff] %v522
    %v526 = vld [vmem:[#allocation2 + $0x18] sm:$0xff]
    %527 = vmatpush.bf16.msra.mxu0 0
    %528 = vmatpush.bf16.msra.mxu0 0
    %529 = vmatpush.bf16.msra.mxu0 0
    %530 = vmatpush.bf16.msra.mxu0 0
    %531 = vmatpush.bf16.msra.mxu0 0
    %532 = vmatpush.bf16.msra.mxu0 0
    %533 = vmatpush.bf16.msra.mxu0 %v374
    %534 = vmatpush.bf16.msra.mxu0 %v373
    %535 = vmatmul.bf16.gmra.mxu0 %v510
    %v536 = vpop.f32.mrf.mxu0
    %v537 = vadd.f32 0.0, %v536
    %v538 = vpop.f32.mrf.mxu0
    %539 = vdwg.mxu0
    %v540 = vadd.f32 %v526, %v537
    %v541 = vxor.u32 %v540, 2147483648
    %v542 = vmul.f32 %v541, 1.442695
    %v543 = vpow.pop %v542
    %v544 = vadd.f32 %v543, 1.0
    %v545 = vrcp.pop %v544
    %v546 = vmul.f32 %v544, %v545
    %v547 = vsub.f32 1.0, %v546
    %v548 = vmul.f32 %v545, %v547
    %v549 = vadd.f32 %v545, %v548
    %vm550 = vweird.f32 %v544
    %vm551 = vweird.f32 %v545
    %vm552 = vmor %vm550, %vm551
    %v553 = vsel %vm552, %v545, %v549
    %v554 = vand.u32 2147483647, %v544
    %vm555 = vcmp.eq.f32.partialorder %v554, 8.507059e+37
    %v556 = vand.u32 %v544, 2147483648
    %v557 = vor.u32 1.1754944e-38, %v556
    %v558 = vsel %vm555, %v557, %v553
    %v559 = vmul.f32 1.0, %v558
    %v560 = vtanh.pop %v540
    %v561 = vmul.f32 %v559, %v498
    %563 = vrot.lane.b32.xlu0 %v560, 32
    %v564 = vpop.permute.xlu0 %563
    %v566 = vmul.f32 %v559, %v564
    %568 = vrot.lane.b32.xlu0 %v566, 32
    %v569 = vpop.permute.xlu0 %568
    %v571 = vadd.f32 %v561, %v569
    %v572 = vtanh.pop %v571
    %574 = vrot.lane.b32.xlu0 %v572, 32
    %v575 = vpop.permute.xlu0 %574
    %v577 = vmul.f32 %v559, %v575
    %v578 = vpack.c.bf16 %v577, %v577
    %580 = vrot.lane.b32.xlu0 %v578, 64
    %v581 = vpop.permute.xlu0 %580
    %v583 = vsel %vm346, %v581, 0
    %585 = vmatpush.bf16.msra.mxu0 0
    %586 = vmatpush.bf16.msra.mxu0 0
    %587 = vmatpush.bf16.msra.mxu0 0
    %588 = vmatpush.bf16.msra.mxu0 0
    %589 = vmatpush.bf16.msra.mxu0 0
    %590 = vmatpush.bf16.msra.mxu0 0
    %591 = vmatpush.bf16.msra.mxu0 %v343
    %592 = vmatpush.bf16.msra.mxu0 %v342
    %593 = vmatmul.bf16.gmra.mxu0 %v583
    %v594 = vpop.f32.mrf.mxu0
    %v595 = vadd.f32 %v329, %v594
    %v596 = vpop.f32.mrf.mxu0
    %597 = vdwg.mxu0
    %598 = vst [vmem:[#allocation3 + $0x18] sm:$0xff] %v595
    %v599 = vld [vmem:[#allocation2 + $0x20] sm:$0xff]
    %600 = vmatpush.bf16.msra.mxu0 0
    %601 = vmatpush.bf16.msra.mxu0 0
    %602 = vmatpush.bf16.msra.mxu0 0
    %603 = vmatpush.bf16.msra.mxu0 0
    %604 = vmatpush.bf16.msra.mxu0 0
    %605 = vmatpush.bf16.msra.mxu0 0
    %606 = vmatpush.bf16.msra.mxu0 %v374
    %607 = vmatpush.bf16.msra.mxu0 %v373
    %608 = vmatmul.bf16.gmra.mxu0 %v583
    %v609 = vpop.f32.mrf.mxu0
    %v610 = vadd.f32 0.0, %v609
    %v611 = vpop.f32.mrf.mxu0
    %612 = vdwg.mxu0
    %v613 = vadd.f32 %v599, %v610
    %v614 = vxor.u32 %v613, 2147483648
    %v615 = vmul.f32 %v614, 1.442695
    %v616 = vpow.pop %v615
    %v617 = vadd.f32 %v616, 1.0
    %v618 = vrcp.pop %v617
    %v619 = vmul.f32 %v617, %v618
    %v620 = vsub.f32 1.0, %v619
    %v621 = vmul.f32 %v618, %v620
    %v622 = vadd.f32 %v618, %v621
    %vm623 = vweird.f32 %v617
    %vm624 = vweird.f32 %v618
    %vm625 = vmor %vm623, %vm624
    %v626 = vsel %vm625, %v618, %v622
    %v627 = vand.u32 2147483647, %v617
    %vm628 = vcmp.eq.f32.partialorder %v627, 8.507059e+37
    %v629 = vand.u32 %v617, 2147483648
    %v630 = vor.u32 1.1754944e-38, %v629
    %v631 = vsel %vm628, %v630, %v626
    %v632 = vmul.f32 1.0, %v631
    %v633 = vtanh.pop %v613
    %v634 = vmul.f32 %v632, %v571
    %636 = vrot.lane.b32.xlu0 %v633, 32
    %v637 = vpop.permute.xlu0 %636
    %v639 = vmul.f32 %v632, %v637
    %641 = vrot.lane.b32.xlu0 %v639, 32
    %v642 = vpop.permute.xlu0 %641
    %v644 = vadd.f32 %v634, %v642
    %v645 = vtanh.pop %v644
    %647 = vrot.lane.b32.xlu0 %v645, 32
    %v648 = vpop.permute.xlu0 %647
    %v650 = vmul.f32 %v632, %v648
    %v651 = vpack.c.bf16 %v650, %v650
    %653 = vrot.lane.b32.xlu0 %v651, 64
    %v654 = vpop.permute.xlu0 %653
    %v656 = vsel %vm346, %v654, 0
    %658 = vmatpush.bf16.msra.mxu0 0
    %659 = vmatpush.bf16.msra.mxu0 0
    %660 = vmatpush.bf16.msra.mxu0 0
    %661 = vmatpush.bf16.msra.mxu0 0
    %662 = vmatpush.bf16.msra.mxu0 0
    %663 = vmatpush.bf16.msra.mxu0 0
    %664 = vmatpush.bf16.msra.mxu0 %v343
    %665 = vmatpush.bf16.msra.mxu0 %v342
    %666 = vmatmul.bf16.gmra.mxu0 %v656
    %v667 = vpop.f32.mrf.mxu0
    %v668 = vadd.f32 %v329, %v667
    %v669 = vpop.f32.mrf.mxu0
    %670 = vdwg.mxu0
    %671 = vst [vmem:[#allocation3 + $0x20] sm:$0xff] %v668
    %v672 = vld [vmem:[#allocation2 + $0x28] sm:$0xff]
    %673 = vmatpush.bf16.msra.mxu0 0
    %674 = vmatpush.bf16.msra.mxu0 0
    %675 = vmatpush.bf16.msra.mxu0 0
    %676 = vmatpush.bf16.msra.mxu0 0
    %677 = vmatpush.bf16.msra.mxu0 0
    %678 = vmatpush.bf16.msra.mxu0 0
    %679 = vmatpush.bf16.msra.mxu0 %v374
    %680 = vmatpush.bf16.msra.mxu0 %v373
    %681 = vmatmul.bf16.gmra.mxu0 %v656
    %v682 = vpop.f32.mrf.mxu0
    %v683 = vadd.f32 0.0, %v682
    %v684 = vpop.f32.mrf.mxu0
    %685 = vdwg.mxu0
    %v686 = vadd.f32 %v672, %v683
    %v687 = vxor.u32 %v686, 2147483648
    %v688 = vmul.f32 %v687, 1.442695
    %v689 = vpow.pop %v688
    %v690 = vadd.f32 %v689, 1.0
    %v691 = vrcp.pop %v690
    %v692 = vmul.f32 %v690, %v691
    %v693 = vsub.f32 1.0, %v692
    %v694 = vmul.f32 %v691, %v693
    %v695 = vadd.f32 %v691, %v694
    %vm696 = vweird.f32 %v690
    %vm697 = vweird.f32 %v691
    %vm698 = vmor %vm696, %vm697
    %v699 = vsel %vm698, %v691, %v695
    %v700 = vand.u32 2147483647, %v690
    %vm701 = vcmp.eq.f32.partialorder %v700, 8.507059e+37
    %v702 = vand.u32 %v690, 2147483648
    %v703 = vor.u32 1.1754944e-38, %v702
    %v704 = vsel %vm701, %v703, %v699
    %v705 = vmul.f32 1.0, %v704
    %v706 = vtanh.pop %v686
    %v707 = vmul.f32 %v705, %v644
    %709 = vrot.lane.b32.xlu0 %v706, 32
    %v710 = vpop.permute.xlu0 %709
    %v712 = vmul.f32 %v705, %v710
    %714 = vrot.lane.b32.xlu0 %v712, 32
    %v715 = vpop.permute.xlu0 %714
    %v717 = vadd.f32 %v707, %v715
    %v718 = vtanh.pop %v717
    %720 = vrot.lane.b32.xlu0 %v718, 32
    %v721 = vpop.permute.xlu0 %720
    %v723 = vmul.f32 %v705, %v721
    %v724 = vpack.c.bf16 %v723, %v723
    %726 = vrot.lane.b32.xlu0 %v724, 64
    %v727 = vpop.permute.xlu0 %726
    %v729 = vsel %vm346, %v727, 0
    %731 = vmatpush.bf16.msra.mxu0 0
    %732 = vmatpush.bf16.msra.mxu0 0
    %733 = vmatpush.bf16.msra.mxu0 0
    %734 = vmatpush.bf16.msra.mxu0 0
    %735 = vmatpush.bf16.msra.mxu0 0
    %736 = vmatpush.bf16.msra.mxu0 0
    %737 = vmatpush.bf16.msra.mxu0 %v343
    %738 = vmatpush.bf16.msra.mxu0 %v342
    %739 = vmatmul.bf16.gmra.mxu0 %v729
    %v740 = vpop.f32.mrf.mxu0
    %v741 = vadd.f32 %v329, %v740
    %v742 = vpop.f32.mrf.mxu0
    %743 = vdwg.mxu0
    %744 = vst [vmem:[#allocation3 + $0x28] sm:$0xff] %v741
    %v745 = vld [vmem:[#allocation2 + $0x30] sm:$0xff]
    %746 = vmatpush.bf16.msra.mxu0 0
    %747 = vmatpush.bf16.msra.mxu0 0
    %748 = vmatpush.bf16.msra.mxu0 0
    %749 = vmatpush.bf16.msra.mxu0 0
    %750 = vmatpush.bf16.msra.mxu0 0
    %751 = vmatpush.bf16.msra.mxu0 0
    %752 = vmatpush.bf16.msra.mxu0 %v374
    %753 = vmatpush.bf16.msra.mxu0 %v373
    %754 = vmatmul.bf16.gmra.mxu0 %v729
    %v755 = vpop.f32.mrf.mxu0
    %v756 = vadd.f32 0.0, %v755
    %v757 = vpop.f32.mrf.mxu0
    %758 = vdwg.mxu0
    %v759 = vadd.f32 %v745, %v756
    %v760 = vxor.u32 %v759, 2147483648
    %v761 = vmul.f32 %v760, 1.442695
    %v762 = vpow.pop %v761
    %v763 = vadd.f32 %v762, 1.0
    %v764 = vrcp.pop %v763
    %v765 = vmul.f32 %v763, %v764
    %v766 = vsub.f32 1.0, %v765
    %v767 = vmul.f32 %v764, %v766
    %v768 = vadd.f32 %v764, %v767
    %vm769 = vweird.f32 %v763
    %vm770 = vweird.f32 %v764
    %vm771 = vmor %vm769, %vm770
    %v772 = vsel %vm771, %v764, %v768
    %v773 = vand.u32 2147483647, %v763
    %vm774 = vcmp.eq.f32.partialorder %v773, 8.507059e+37
    %v775 = vand.u32 %v763, 2147483648
    %v776 = vor.u32 1.1754944e-38, %v775
    %v777 = vsel %vm774, %v776, %v772
    %v778 = vmul.f32 1.0, %v777
    %v779 = vtanh.pop %v759
    %v780 = vmul.f32 %v778, %v717
    %782 = vrot.lane.b32.xlu0 %v779, 32
    %v783 = vpop.permute.xlu0 %782
    %v785 = vmul.f32 %v778, %v783
    %787 = vrot.lane.b32.xlu0 %v785, 32
    %v788 = vpop.permute.xlu0 %787
    %v790 = vadd.f32 %v780, %v788
    %v791 = vtanh.pop %v790
    %793 = vrot.lane.b32.xlu0 %v791, 32
    %v794 = vpop.permute.xlu0 %793
    %v796 = vmul.f32 %v778, %v794
    %v797 = vpack.c.bf16 %v796, %v796
    %799 = vrot.lane.b32.xlu0 %v797, 64
    %v800 = vpop.permute.xlu0 %799
    %v802 = vsel %vm346, %v800, 0
    %804 = vmatpush.bf16.msra.mxu0 0
    %805 = vmatpush.bf16.msra.mxu0 0
    %806 = vmatpush.bf16.msra.mxu0 0
    %807 = vmatpush.bf16.msra.mxu0 0
    %808 = vmatpush.bf16.msra.mxu0 0
    %809 = vmatpush.bf16.msra.mxu0 0
    %810 = vmatpush.bf16.msra.mxu0 %v343
    %811 = vmatpush.bf16.msra.mxu0 %v342
    %812 = vmatmul.bf16.gmra.mxu0 %v802
    %v813 = vpop.f32.mrf.mxu0
    %v814 = vadd.f32 %v329, %v813
    %v815 = vpop.f32.mrf.mxu0
    %816 = vdwg.mxu0
    %817 = vst [vmem:[#allocation3 + $0x30] sm:$0xff] %v814
    %v818 = vld [vmem:[#allocation2 + $0x38] sm:$0xff]
    %819 = vmatpush.bf16.msra.mxu0 0
    %820 = vmatpush.bf16.msra.mxu0 0
    %821 = vmatpush.bf16.msra.mxu0 0
    %822 = vmatpush.bf16.msra.mxu0 0
    %823 = vmatpush.bf16.msra.mxu0 0
    %824 = vmatpush.bf16.msra.mxu0 0
    %825 = vmatpush.bf16.msra.mxu0 %v374
    %826 = vmatpush.bf16.msra.mxu0 %v373
    %827 = vmatmul.bf16.gmra.mxu0 %v802
    %v828 = vpop.f32.mrf.mxu0
    %v829 = vadd.f32 0.0, %v828
    %v830 = vpop.f32.mrf.mxu0
    %831 = vdwg.mxu0
    %v832 = vadd.f32 %v818, %v829
    %v833 = vxor.u32 %v832, 2147483648
    %v834 = vmul.f32 %v833, 1.442695
    %v835 = vpow.pop %v834
    %v836 = vadd.f32 %v835, 1.0
    %v837 = vrcp.pop %v836
    %v838 = vmul.f32 %v836, %v837
    %v839 = vsub.f32 1.0, %v838
    %v840 = vmul.f32 %v837, %v839
    %v841 = vadd.f32 %v837, %v840
    %vm842 = vweird.f32 %v836
    %vm843 = vweird.f32 %v837
    %vm844 = vmor %vm842, %vm843
    %v845 = vsel %vm844, %v837, %v841
    %v846 = vand.u32 2147483647, %v836
    %vm847 = vcmp.eq.f32.partialorder %v846, 8.507059e+37
    %v848 = vand.u32 %v836, 2147483648
    %v849 = vor.u32 1.1754944e-38, %v848
    %v850 = vsel %vm847, %v849, %v845
    %v851 = vmul.f32 1.0, %v850
    %v852 = vtanh.pop %v832
    %v853 = vmul.f32 %v851, %v790
    %855 = vrot.lane.b32.xlu0 %v852, 32
    %v856 = vpop.permute.xlu0 %855
    %v858 = vmul.f32 %v851, %v856
    %860 = vrot.lane.b32.xlu0 %v858, 32
    %v861 = vpop.permute.xlu0 %860
    %v863 = vadd.f32 %v853, %v861
    %v864 = vtanh.pop %v863
    %866 = vrot.lane.b32.xlu0 %v864, 32
    %v867 = vpop.permute.xlu0 %866
    %v869 = vmul.f32 %v851, %v867
    %v870 = vpack.c.bf16 %v869, %v869
    %872 = vrot.lane.b32.xlu0 %v870, 64
    %v873 = vpop.permute.xlu0 %872
    %v875 = vsel %vm346, %v873, 0
    %877 = vmatpush.bf16.msra.mxu0 0
    %878 = vmatpush.bf16.msra.mxu0 0
    %879 = vmatpush.bf16.msra.mxu0 0
    %880 = vmatpush.bf16.msra.mxu0 0
    %881 = vmatpush.bf16.msra.mxu0 0
    %882 = vmatpush.bf16.msra.mxu0 0
    %883 = vmatpush.bf16.msra.mxu0 %v343
    %884 = vmatpush.bf16.msra.mxu0 %v342
    %885 = vmatmul.bf16.gmra.mxu0 %v875
    %v886 = vpop.f32.mrf.mxu0
    %v887 = vadd.f32 %v329, %v886
    %v888 = vpop.f32.mrf.mxu0
    %889 = vdwg.mxu0
    %890 = vst [vmem:[#allocation3 + $0x38] sm:$0xff] %v887
    %s891 = scalar_lea.vmem [#allocation4], 16
    %v892 = vld [vmem:[%s891] sm:$0xf]
    %v893 = vld [vmem:[%s891 + $0x4] sm:$0xf]
    %v894 = vld [vmem:[%s891 + $0x8] sm:$0xf]
    %v895 = vld [vmem:[%s891 + $0xc] sm:$0xf]
    %s896 = scalar_lea.vmem %s1, 32
    %v897 = vld [vmem:[%s896] sm:$0xf]
    %v898 = vld [vmem:[%s896 + $0x4] sm:$0xf]
    %v899 = vld [vmem:[%s896 + $0x8] sm:$0xf]
    %v900 = vld [vmem:[%s896 + $0xc] sm:$0xf]
    %s901 = scalar_lea.vmem %s3, 2
    %v902 = vld [vmem:[%s901] sm:$0x1]
    %v903 = vld [vmem:[#allocation3] sm:$0xff]
    %v904 = vxor.u32 %v903, 2147483648
    %v905 = vmul.f32 %v904, 1.442695
    %v906 = vpow.pop %v905
    %v907 = vadd.f32 %v906, 1.0
    %v908 = vrcp.pop %v907
    %v909 = vmul.f32 %v907, %v908
    %v910 = vsub.f32 1.0, %v909
    %v911 = vmul.f32 %v908, %v910
    %v912 = vadd.f32 %v908, %v911
    %vm913 = vweird.f32 %v907
    %vm914 = vweird.f32 %v908
    %vm915 = vmor %vm913, %vm914
    %v916 = vsel %vm915, %v908, %v912
    %v917 = vand.u32 2147483647, %v907
    %vm918 = vcmp.eq.f32.partialorder %v917, 8.507059e+37
    %v919 = vand.u32 %v907, 2147483648
    %v920 = vor.u32 1.1754944e-38, %v919
    %v921 = vsel %vm918, %v920, %v916
    %v922 = vmul.f32 1.0, %v921
    %v923 = vtanh.pop %v903
    %925 = vrot.lane.b32.xlu0 %v923, 32
    %v926 = vpop.permute.xlu0 %925
    %v928 = vmul.f32 %v922, %v926
    %v929 = vtanh.pop %v928
    %931 = vrot.lane.b32.xlu0 %v929, 64
    %v932 = vpop.permute.xlu0 %931
    %v934 = vmul.f32 %v922, %v932
    %v935 = vpack.c.bf16 %v934, %v934
    %v937 = vperm.slane %v902, 0
    %940 = vrot.lane.b32.xlu0 %v935, 64
    %v941 = vpop.permute.xlu0 %940
    %v946 = vunpack.c.l.b16 %v897
    %v947 = vunpack.c.l.b16 %v898
    %v948 = vunpack.c.l.b16 %v899
    %v949 = vunpack.c.l.b16 %v900
    %v950 = vpack.c.b16 %v947, %v946
    %v951 = vpack.c.b16 %v949, %v948
    %v955 = vsel %vm346, %v941, 0
    %957 = vmatpush.bf16.msra.mxu0 0
    %958 = vmatpush.bf16.msra.mxu0 0
    %959 = vmatpush.bf16.msra.mxu0 0
    %960 = vmatpush.bf16.msra.mxu0 0
    %961 = vmatpush.bf16.msra.mxu0 0
    %962 = vmatpush.bf16.msra.mxu0 0
    %963 = vmatpush.bf16.msra.mxu0 %v951
    %964 = vmatpush.bf16.msra.mxu0 %v950
    %965 = vmatmul.bf16.gmra.mxu0 %v955
    %v966 = vpop.f32.mrf.mxu0
    %v967 = vadd.f32 %v937, %v966
    %v968 = vpop.f32.mrf.mxu0
    %969 = vdwg.mxu0
    %970 = vst [vmem:[#allocation2] sm:$0xff] %v967
    %v971 = vld [vmem:[#allocation3 + $0x8] sm:$0xff]
    %v976 = vunpack.c.l.b16 %v892
    %v977 = vunpack.c.l.b16 %v893
    %v978 = vunpack.c.l.b16 %v894
    %v979 = vunpack.c.l.b16 %v895
    %v980 = vpack.c.b16 %v977, %v976
    %v981 = vpack.c.b16 %v979, %v978
    %984 = vmatpush.bf16.msra.mxu0 0
    %985 = vmatpush.bf16.msra.mxu0 0
    %986 = vmatpush.bf16.msra.mxu0 0
    %987 = vmatpush.bf16.msra.mxu0 0
    %988 = vmatpush.bf16.msra.mxu0 0
    %989 = vmatpush.bf16.msra.mxu0 0
    %990 = vmatpush.bf16.msra.mxu0 %v981
    %991 = vmatpush.bf16.msra.mxu0 %v980
    %992 = vmatmul.bf16.gmra.mxu0 %v955
    %v993 = vpop.f32.mrf.mxu0
    %v994 = vadd.f32 0.0, %v993
    %v995 = vpop.f32.mrf.mxu0
    %996 = vdwg.mxu0
    %v997 = vadd.f32 %v971, %v994
    %v998 = vxor.u32 %v997, 2147483648
    %v999 = vmul.f32 %v998, 1.442695
    %v1000 = vpow.pop %v999
    %v1001 = vadd.f32 %v1000, 1.0
    %v1002 = vrcp.pop %v1001
    %v1003 = vmul.f32 %v1001, %v1002
    %v1004 = vsub.f32 1.0, %v1003
    %v1005 = vmul.f32 %v1002, %v1004
    %v1006 = vadd.f32 %v1002, %v1005
    %vm1007 = vweird.f32 %v1001
    %vm1008 = vweird.f32 %v1002
    %vm1009 = vmor %vm1007, %vm1008
    %v1010 = vsel %vm1009, %v1002, %v1006
    %v1011 = vand.u32 2147483647, %v1001
    %vm1012 = vcmp.eq.f32.partialorder %v1011, 8.507059e+37
    %v1013 = vand.u32 %v1001, 2147483648
    %v1014 = vor.u32 1.1754944e-38, %v1013
    %v1015 = vsel %vm1012, %v1014, %v1010
    %v1016 = vmul.f32 1.0, %v1015
    %v1017 = vtanh.pop %v997
    %1019 = vrot.lane.b32.xlu0 %v928, 32
    %v1020 = vpop.permute.xlu0 %1019
    %v1022 = vmul.f32 %v1016, %v1020
    %1024 = vrot.lane.b32.xlu0 %v1017, 32
    %v1025 = vpop.permute.xlu0 %1024
    %v1027 = vmul.f32 %v1016, %v1025
    %1029 = vrot.lane.b32.xlu0 %v1027, 32
    %v1030 = vpop.permute.xlu0 %1029
    %v1032 = vadd.f32 %v1022, %v1030
    %v1033 = vtanh.pop %v1032
    %1035 = vrot.lane.b32.xlu0 %v1033, 32
    %v1036 = vpop.permute.xlu0 %1035
    %v1038 = vmul.f32 %v1016, %v1036
    %v1039 = vpack.c.bf16 %v1038, %v1038
    %1041 = vrot.lane.b32.xlu0 %v1039, 64
    %v1042 = vpop.permute.xlu0 %1041
    %v1044 = vsel %vm346, %v1042, 0
    %1046 = vmatpush.bf16.msra.mxu0 0
    %1047 = vmatpush.bf16.msra.mxu0 0
    %1048 = vmatpush.bf16.msra.mxu0 0
    %1049 = vmatpush.bf16.msra.mxu0 0
    %1050 = vmatpush.bf16.msra.mxu0 0
    %1051 = vmatpush.bf16.msra.mxu0 0
    %1052 = vmatpush.bf16.msra.mxu0 %v951
    %1053 = vmatpush.bf16.msra.mxu0 %v950
    %1054 = vmatmul.bf16.gmra.mxu0 %v1044
    %v1055 = vpop.f32.mrf.mxu0
    %v1056 = vadd.f32 %v937, %v1055
    %v1057 = vpop.f32.mrf.mxu0
    %1058 = vdwg.mxu0
    %1059 = vst [vmem:[#allocation2 + $0x8] sm:$0xff] %v1056
    %v1060 = vld [vmem:[#allocation3 + $0x10] sm:$0xff]
    %1061 = vmatpush.bf16.msra.mxu0 0
    %1062 = vmatpush.bf16.msra.mxu0 0
    %1063 = vmatpush.bf16.msra.mxu0 0
    %1064 = vmatpush.bf16.msra.mxu0 0
    %1065 = vmatpush.bf16.msra.mxu0 0
    %1066 = vmatpush.bf16.msra.mxu0 0
    %1067 = vmatpush.bf16.msra.mxu0 %v981
    %1068 = vmatpush.bf16.msra.mxu0 %v980
    %1069 = vmatmul.bf16.gmra.mxu0 %v1044
    %v1070 = vpop.f32.mrf.mxu0
    %v1071 = vadd.f32 0.0, %v1070
    %v1072 = vpop.f32.mrf.mxu0
    %1073 = vdwg.mxu0
    %v1074 = vadd.f32 %v1060, %v1071
    %v1075 = vxor.u32 %v1074, 2147483648
    %v1076 = vmul.f32 %v1075, 1.442695
    %v1077 = vpow.pop %v1076
    %v1078 = vadd.f32 %v1077, 1.0
    %v1079 = vrcp.pop %v1078
    %v1080 = vmul.f32 %v1078, %v1079
    %v1081 = vsub.f32 1.0, %v1080
    %v1082 = vmul.f32 %v1079, %v1081
    %v1083 = vadd.f32 %v1079, %v1082
    %vm1084 = vweird.f32 %v1078
    %vm1085 = vweird.f32 %v1079
    %vm1086 = vmor %vm1084, %vm1085
    %v1087 = vsel %vm1086, %v1079, %v1083
    %v1088 = vand.u32 2147483647, %v1078
    %vm1089 = vcmp.eq.f32.partialorder %v1088, 8.507059e+37
    %v1090 = vand.u32 %v1078, 2147483648
    %v1091 = vor.u32 1.1754944e-38, %v1090
    %v1092 = vsel %vm1089, %v1091, %v1087
    %v1093 = vmul.f32 1.0, %v1092
    %v1094 = vtanh.pop %v1074
    %v1095 = vmul.f32 %v1093, %v1032
    %1097 = vrot.lane.b32.xlu0 %v1094, 32
    %v1098 = vpop.permute.xlu0 %1097
    %v1100 = vmul.f32 %v1093, %v1098
    %1102 = vrot.lane.b32.xlu0 %v1100, 32
    %v1103 = vpop.permute.xlu0 %1102
    %v1105 = vadd.f32 %v1095, %v1103
    %v1106 = vtanh.pop %v1105
    %1108 = vrot.lane.b32.xlu0 %v1106, 32
    %v1109 = vpop.permute.xlu0 %1108
    %v1111 = vmul.f32 %v1093, %v1109
    %v1112 = vpack.c.bf16 %v1111, %v1111
    %1114 = vrot.lane.b32.xlu0 %v1112, 64
    %v1115 = vpop.permute.xlu0 %1114
    %v1117 = vsel %vm346, %v1115, 0
    %1119 = vmatpush.bf16.msra.mxu0 0
    %1120 = vmatpush.bf16.msra.mxu0 0
    %1121 = vmatpush.bf16.msra.mxu0 0
    %1122 = vmatpush.bf16.msra.mxu0 0
    %1123 = vmatpush.bf16.msra.mxu0 0
    %1124 = vmatpush.bf16.msra.mxu0 0
    %1125 = vmatpush.bf16.msra.mxu0 %v951
    %1126 = vmatpush.bf16.msra.mxu0 %v950
    %1127 = vmatmul.bf16.gmra.mxu0 %v1117
    %v1128 = vpop.f32.mrf.mxu0
    %v1129 = vadd.f32 %v937, %v1128
    %v1130 = vpop.f32.mrf.mxu0
    %1131 = vdwg.mxu0
    %1132 = vst [vmem:[#allocation2 + $0x10] sm:$0xff] %v1129
    %v1133 = vld [vmem:[#allocation3 + $0x18] sm:$0xff]
    %1134 = vmatpush.bf16.msra.mxu0 0
    %1135 = vmatpush.bf16.msra.mxu0 0
    %1136 = vmatpush.bf16.msra.mxu0 0
    %1137 = vmatpush.bf16.msra.mxu0 0
    %1138 = vmatpush.bf16.msra.mxu0 0
    %1139 = vmatpush.bf16.msra.mxu0 0
    %1140 = vmatpush.bf16.msra.mxu0 %v981
    %1141 = vmatpush.bf16.msra.mxu0 %v980
    %1142 = vmatmul.bf16.gmra.mxu0 %v1117
    %v1143 = vpop.f32.mrf.mxu0
    %v1144 = vadd.f32 0.0, %v1143
    %v1145 = vpop.f32.mrf.mxu0
    %1146 = vdwg.mxu0
    %v1147 = vadd.f32 %v1133, %v1144
    %v1148 = vxor.u32 %v1147, 2147483648
    %v1149 = vmul.f32 %v1148, 1.442695
    %v1150 = vpow.pop %v1149
    %v1151 = vadd.f32 %v1150, 1.0
    %v1152 = vrcp.pop %v1151
    %v1153 = vmul.f32 %v1151, %v1152
    %v1154 = vsub.f32 1.0, %v1153
    %v1155 = vmul.f32 %v1152, %v1154
    %v1156 = vadd.f32 %v1152, %v1155
    %vm1157 = vweird.f32 %v1151
    %vm1158 = vweird.f32 %v1152
    %vm1159 = vmor %vm1157, %vm1158
    %v1160 = vsel %vm1159, %v1152, %v1156
    %v1161 = vand.u32 2147483647, %v1151
    %vm1162 = vcmp.eq.f32.partialorder %v1161, 8.507059e+37
    %v1163 = vand.u32 %v1151, 2147483648
    %v1164 = vor.u32 1.1754944e-38, %v1163
    %v1165 = vsel %vm1162, %v1164, %v1160
    %v1166 = vmul.f32 1.0, %v1165
    %v1167 = vtanh.pop %v1147
    %v1168 = vmul.f32 %v1166, %v1105
    %1170 = vrot.lane.b32.xlu0 %v1167, 32
    %v1171 = vpop.permute.xlu0 %1170
    %v1173 = vmul.f32 %v1166, %v1171
    %1175 = vrot.lane.b32.xlu0 %v1173, 32
    %v1176 = vpop.permute.xlu0 %1175
    %v1178 = vadd.f32 %v1168, %v1176
    %v1179 = vtanh.pop %v1178
    %1181 = vrot.lane.b32.xlu0 %v1179, 32
    %v1182 = vpop.permute.xlu0 %1181
    %v1184 = vmul.f32 %v1166, %v1182
    %v1185 = vpack.c.bf16 %v1184, %v1184
    %1187 = vrot.lane.b32.xlu0 %v1185, 64
    %v1188 = vpop.permute.xlu0 %1187
    %v1190 = vsel %vm346, %v1188, 0
    %1192 = vmatpush.bf16.msra.mxu0 0
    %1193 = vmatpush.bf16.msra.mxu0 0
    %1194 = vmatpush.bf16.msra.mxu0 0
    %1195 = vmatpush.bf16.msra.mxu0 0
    %1196 = vmatpush.bf16.msra.mxu0 0
    %1197 = vmatpush.bf16.msra.mxu0 0
    %1198 = vmatpush.bf16.msra.mxu0 %v951
    %1199 = vmatpush.bf16.msra.mxu0 %v950
    %1200 = vmatmul.bf16.gmra.mxu0 %v1190
    %v1201 = vpop.f32.mrf.mxu0
    %v1202 = vadd.f32 %v937, %v1201
    %v1203 = vpop.f32.mrf.mxu0
    %1204 = vdwg.mxu0
    %1205 = vst [vmem:[#allocation2 + $0x18] sm:$0xff] %v1202
    %v1206 = vld [vmem:[#allocation3 + $0x20] sm:$0xff]
    %1207 = vmatpush.bf16.msra.mxu0 0
    %1208 = vmatpush.bf16.msra.mxu0 0
    %1209 = vmatpush.bf16.msra.mxu0 0
    %1210 = vmatpush.bf16.msra.mxu0 0
    %1211 = vmatpush.bf16.msra.mxu0 0
    %1212 = vmatpush.bf16.msra.mxu0 0
    %1213 = vmatpush.bf16.msra.mxu0 %v981
    %1214 = vmatpush.bf16.msra.mxu0 %v980
    %1215 = vmatmul.bf16.gmra.mxu0 %v1190
    %v1216 = vpop.f32.mrf.mxu0
    %v1217 = vadd.f32 0.0, %v1216
    %v1218 = vpop.f32.mrf.mxu0
    %1219 = vdwg.mxu0
    %v1220 = vadd.f32 %v1206, %v1217
    %v1221 = vxor.u32 %v1220, 2147483648
    %v1222 = vmul.f32 %v1221, 1.442695
    %v1223 = vpow.pop %v1222
    %v1224 = vadd.f32 %v1223, 1.0
    %v1225 = vrcp.pop %v1224
    %v1226 = vmul.f32 %v1224, %v1225
    %v1227 = vsub.f32 1.0, %v1226
    %v1228 = vmul.f32 %v1225, %v1227
    %v1229 = vadd.f32 %v1225, %v1228
    %vm1230 = vweird.f32 %v1224
    %vm1231 = vweird.f32 %v1225
    %vm1232 = vmor %vm1230, %vm1231
    %v1233 = vsel %vm1232, %v1225, %v1229
    %v1234 = vand.u32 2147483647, %v1224
    %vm1235 = vcmp.eq.f32.partialorder %v1234, 8.507059e+37
    %v1236 = vand.u32 %v1224, 2147483648
    %v1237 = vor.u32 1.1754944e-38, %v1236
    %v1238 = vsel %vm1235, %v1237, %v1233
    %v1239 = vmul.f32 1.0, %v1238
    %v1240 = vtanh.pop %v1220
    %v1241 = vmul.f32 %v1239, %v1178
    %1243 = vrot.lane.b32.xlu0 %v1240, 32
    %v1244 = vpop.permute.xlu0 %1243
    %v1246 = vmul.f32 %v1239, %v1244
    %1248 = vrot.lane.b32.xlu0 %v1246, 32
    %v1249 = vpop.permute.xlu0 %1248
    %v1251 = vadd.f32 %v1241, %v1249
    %v1252 = vtanh.pop %v1251
    %1254 = vrot.lane.b32.xlu0 %v1252, 32
    %v1255 = vpop.permute.xlu0 %1254
    %v1257 = vmul.f32 %v1239, %v1255
    %v1258 = vpack.c.bf16 %v1257, %v1257
    %1260 = vrot.lane.b32.xlu0 %v1258, 64
    %v1261 = vpop.permute.xlu0 %1260
    %v1263 = vsel %vm346, %v1261, 0
    %1265 = vmatpush.bf16.msra.mxu0 0
    %1266 = vmatpush.bf16.msra.mxu0 0
    %1267 = vmatpush.bf16.msra.mxu0 0
    %1268 = vmatpush.bf16.msra.mxu0 0
    %1269 = vmatpush.bf16.msra.mxu0 0
    %1270 = vmatpush.bf16.msra.mxu0 0
    %1271 = vmatpush.bf16.msra.mxu0 %v951
    %1272 = vmatpush.bf16.msra.mxu0 %v950
    %1273 = vmatmul.bf16.gmra.mxu0 %v1263
    %v1274 = vpop.f32.mrf.mxu0
    %v1275 = vadd.f32 %v937, %v1274
    %v1276 = vpop.f32.mrf.mxu0
    %1277 = vdwg.mxu0
    %1278 = vst [vmem:[#allocation2 + $0x20] sm:$0xff] %v1275
    %v1279 = vld [vmem:[#allocation3 + $0x28] sm:$0xff]
    %1280 = vmatpush.bf16.msra.mxu0 0
    %1281 = vmatpush.bf16.msra.mxu0 0
    %1282 = vmatpush.bf16.msra.mxu0 0
    %1283 = vmatpush.bf16.msra.mxu0 0
    %1284 = vmatpush.bf16.msra.mxu0 0
    %1285 = vmatpush.bf16.msra.mxu0 0
    %1286 = vmatpush.bf16.msra.mxu0 %v981
    %1287 = vmatpush.bf16.msra.mxu0 %v980
    %1288 = vmatmul.bf16.gmra.mxu0 %v1263
    %v1289 = vpop.f32.mrf.mxu0
    %v1290 = vadd.f32 0.0, %v1289
    %v1291 = vpop.f32.mrf.mxu0
    %1292 = vdwg.mxu0
    %v1293 = vadd.f32 %v1279, %v1290
    %v1294 = vxor.u32 %v1293, 2147483648
    %v1295 = vmul.f32 %v1294, 1.442695
    %v1296 = vpow.pop %v1295
    %v1297 = vadd.f32 %v1296, 1.0
    %v1298 = vrcp.pop %v1297
    %v1299 = vmul.f32 %v1297, %v1298
    %v1300 = vsub.f32 1.0, %v1299
    %v1301 = vmul.f32 %v1298, %v1300
    %v1302 = vadd.f32 %v1298, %v1301
    %vm1303 = vweird.f32 %v1297
    %vm1304 = vweird.f32 %v1298
    %vm1305 = vmor %vm1303, %vm1304
    %v1306 = vsel %vm1305, %v1298, %v1302
    %v1307 = vand.u32 2147483647, %v1297
    %vm1308 = vcmp.eq.f32.partialorder %v1307, 8.507059e+37
    %v1309 = vand.u32 %v1297, 2147483648
    %v1310 = vor.u32 1.1754944e-38, %v1309
    %v1311 = vsel %vm1308, %v1310, %v1306
    %v1312 = vmul.f32 1.0, %v1311
    %v1313 = vtanh.pop %v1293
    %v1314 = vmul.f32 %v1312, %v1251
    %1316 = vrot.lane.b32.xlu0 %v1313, 32
    %v1317 = vpop.permute.xlu0 %1316
    %v1319 = vmul.f32 %v1312, %v1317
    %1321 = vrot.lane.b32.xlu0 %v1319, 32
    %v1322 = vpop.permute.xlu0 %1321
    %v1324 = vadd.f32 %v1314, %v1322
    %v1325 = vtanh.pop %v1324
    %1327 = vrot.lane.b32.xlu0 %v1325, 32
    %v1328 = vpop.permute.xlu0 %1327
    %v1330 = vmul.f32 %v1312, %v1328
    %v1331 = vpack.c.bf16 %v1330, %v1330
    %1333 = vrot.lane.b32.xlu0 %v1331, 64
    %v1334 = vpop.permute.xlu0 %1333
    %v1336 = vsel %vm346, %v1334, 0
    %1338 = vmatpush.bf16.msra.mxu0 0
    %1339 = vmatpush.bf16.msra.mxu0 0
    %1340 = vmatpush.bf16.msra.mxu0 0
    %1341 = vmatpush.bf16.msra.mxu0 0
    %1342 = vmatpush.bf16.msra.mxu0 0
    %1343 = vmatpush.bf16.msra.mxu0 0
    %1344 = vmatpush.bf16.msra.mxu0 %v951
    %1345 = vmatpush.bf16.msra.mxu0 %v950
    %1346 = vmatmul.bf16.gmra.mxu0 %v1336
    %v1347 = vpop.f32.mrf.mxu0
    %v1348 = vadd.f32 %v937, %v1347
    %v1349 = vpop.f32.mrf.mxu0
    %1350 = vdwg.mxu0
    %1351 = vst [vmem:[#allocation2 + $0x28] sm:$0xff] %v1348
    %v1352 = vld [vmem:[#allocation3 + $0x30] sm:$0xff]
    %1353 = vmatpush.bf16.msra.mxu0 0
    %1354 = vmatpush.bf16.msra.mxu0 0
    %1355 = vmatpush.bf16.msra.mxu0 0
    %1356 = vmatpush.bf16.msra.mxu0 0
    %1357 = vmatpush.bf16.msra.mxu0 0
    %1358 = vmatpush.bf16.msra.mxu0 0
    %1359 = vmatpush.bf16.msra.mxu0 %v981
    %1360 = vmatpush.bf16.msra.mxu0 %v980
    %1361 = vmatmul.bf16.gmra.mxu0 %v1336
    %v1362 = vpop.f32.mrf.mxu0
    %v1363 = vadd.f32 0.0, %v1362
    %v1364 = vpop.f32.mrf.mxu0
    %1365 = vdwg.mxu0
    %v1366 = vadd.f32 %v1352, %v1363
    %v1367 = vxor.u32 %v1366, 2147483648
    %v1368 = vmul.f32 %v1367, 1.442695
    %v1369 = vpow.pop %v1368
    %v1370 = vadd.f32 %v1369, 1.0
    %v1371 = vrcp.pop %v1370
    %v1372 = vmul.f32 %v1370, %v1371
    %v1373 = vsub.f32 1.0, %v1372
    %v1374 = vmul.f32 %v1371, %v1373
    %v1375 = vadd.f32 %v1371, %v1374
    %vm1376 = vweird.f32 %v1370
    %vm1377 = vweird.f32 %v1371
    %vm1378 = vmor %vm1376, %vm1377
    %v1379 = vsel %vm1378, %v1371, %v1375
    %v1380 = vand.u32 2147483647, %v1370
    %vm1381 = vcmp.eq.f32.partialorder %v1380, 8.507059e+37
    %v1382 = vand.u32 %v1370, 2147483648
    %v1383 = vor.u32 1.1754944e-38, %v1382
    %v1384 = vsel %vm1381, %v1383, %v1379
    %v1385 = vmul.f32 1.0, %v1384
    %v1386 = vtanh.pop %v1366
    %v1387 = vmul.f32 %v1385, %v1324
    %1389 = vrot.lane.b32.xlu0 %v1386, 32
    %v1390 = vpop.permute.xlu0 %1389
    %v1392 = vmul.f32 %v1385, %v1390
    %1394 = vrot.lane.b32.xlu0 %v1392, 32
    %v1395 = vpop.permute.xlu0 %1394
    %v1397 = vadd.f32 %v1387, %v1395
    %v1398 = vtanh.pop %v1397
    %1400 = vrot.lane.b32.xlu0 %v1398, 32
    %v1401 = vpop.permute.xlu0 %1400
    %v1403 = vmul.f32 %v1385, %v1401
    %v1404 = vpack.c.bf16 %v1403, %v1403
    %1406 = vrot.lane.b32.xlu0 %v1404, 64
    %v1407 = vpop.permute.xlu0 %1406
    %v1409 = vsel %vm346, %v1407, 0
    %1411 = vmatpush.bf16.msra.mxu0 0
    %1412 = vmatpush.bf16.msra.mxu0 0
    %1413 = vmatpush.bf16.msra.mxu0 0
    %1414 = vmatpush.bf16.msra.mxu0 0
    %1415 = vmatpush.bf16.msra.mxu0 0
    %1416 = vmatpush.bf16.msra.mxu0 0
    %1417 = vmatpush.bf16.msra.mxu0 %v951
    %1418 = vmatpush.bf16.msra.mxu0 %v950
    %1419 = vmatmul.bf16.gmra.mxu0 %v1409
    %v1420 = vpop.f32.mrf.mxu0
    %v1421 = vadd.f32 %v937, %v1420
    %v1422 = vpop.f32.mrf.mxu0
    %1423 = vdwg.mxu0
    %1424 = vst [vmem:[#allocation2 + $0x30] sm:$0xff] %v1421
    %v1425 = vld [vmem:[#allocation3 + $0x38] sm:$0xff]
    %1426 = vmatpush.bf16.msra.mxu0 0
    %1427 = vmatpush.bf16.msra.mxu0 0
    %1428 = vmatpush.bf16.msra.mxu0 0
    %1429 = vmatpush.bf16.msra.mxu0 0
    %1430 = vmatpush.bf16.msra.mxu0 0
    %1431 = vmatpush.bf16.msra.mxu0 0
    %1432 = vmatpush.bf16.msra.mxu0 %v981
    %1433 = vmatpush.bf16.msra.mxu0 %v980
    %1434 = vmatmul.bf16.gmra.mxu0 %v1409
    %v1435 = vpop.f32.mrf.mxu0
    %v1436 = vadd.f32 0.0, %v1435
    %v1437 = vpop.f32.mrf.mxu0
    %1438 = vdwg.mxu0
    %v1439 = vadd.f32 %v1425, %v1436
    %v1440 = vxor.u32 %v1439, 2147483648
    %v1441 = vmul.f32 %v1440, 1.442695
    %v1442 = vpow.pop %v1441
    %v1443 = vadd.f32 %v1442, 1.0
    %v1444 = vrcp.pop %v1443
    %v1445 = vmul.f32 %v1443, %v1444
    %v1446 = vsub.f32 1.0, %v1445
    %v1447 = vmul.f32 %v1444, %v1446
    %v1448 = vadd.f32 %v1444, %v1447
    %vm1449 = vweird.f32 %v1443
    %vm1450 = vweird.f32 %v1444
    %vm1451 = vmor %vm1449, %vm1450
    %v1452 = vsel %vm1451, %v1444, %v1448
    %v1453 = vand.u32 2147483647, %v1443
    %vm1454 = vcmp.eq.f32.partialorder %v1453, 8.507059e+37
    %v1455 = vand.u32 %v1443, 2147483648
    %v1456 = vor.u32 1.1754944e-38, %v1455
    %v1457 = vsel %vm1454, %v1456, %v1452
    %v1458 = vmul.f32 1.0, %v1457
    %v1459 = vtanh.pop %v1439
    %v1460 = vmul.f32 %v1458, %v1397
    %1462 = vrot.lane.b32.xlu0 %v1459, 32
    %v1463 = vpop.permute.xlu0 %1462
    %v1465 = vmul.f32 %v1458, %v1463
    %1467 = vrot.lane.b32.xlu0 %v1465, 32
    %v1468 = vpop.permute.xlu0 %1467
    %v1470 = vadd.f32 %v1460, %v1468
    %v1471 = vtanh.pop %v1470
    %1473 = vrot.lane.b32.xlu0 %v1471, 32
    %v1474 = vpop.permute.xlu0 %1473
    %v1476 = vmul.f32 %v1458, %v1474
    %v1477 = vpack.c.bf16 %v1476, %v1476
    %1479 = vrot.lane.b32.xlu0 %v1477, 64
    %v1480 = vpop.permute.xlu0 %1479
    %v1482 = vsel %vm346, %v1480, 0
    %1484 = vmatpush.bf16.msra.mxu0 0
    %1485 = vmatpush.bf16.msra.mxu0 0
    %1486 = vmatpush.bf16.msra.mxu0 0
    %1487 = vmatpush.bf16.msra.mxu0 0
    %1488 = vmatpush.bf16.msra.mxu0 0
    %1489 = vmatpush.bf16.msra.mxu0 0
    %1490 = vmatpush.bf16.msra.mxu0 %v951
    %1491 = vmatpush.bf16.msra.mxu0 %v950
    %1492 = vmatmul.bf16.gmra.mxu0 %v1482
    %v1493 = vpop.f32.mrf.mxu0
    %v1494 = vadd.f32 %v937, %v1493
    %v1495 = vpop.f32.mrf.mxu0
    %1496 = vdwg.mxu0
    %1497 = vst [vmem:[#allocation2 + $0x38] sm:$0xff] %v1494
    %s1498 = scalar_lea.vmem [#allocation4], 32
    %v1499 = vld [vmem:[%s1498] sm:$0xf]
    %v1500 = vld [vmem:[%s1498 + $0x4] sm:$0xf]
    %v1501 = vld [vmem:[%s1498 + $0x8] sm:$0xf]
    %v1502 = vld [vmem:[%s1498 + $0xc] sm:$0xf]
    %v1503 = vld [vmem:[#allocation2] sm:$0xff]
    %v1504 = vxor.u32 %v1503, 2147483648
    %v1505 = vmul.f32 %v1504, 1.442695
    %v1506 = vpow.pop %v1505
    %v1507 = vadd.f32 %v1506, 1.0
    %v1508 = vrcp.pop %v1507
    %v1509 = vmul.f32 %v1507, %v1508
    %v1510 = vsub.f32 1.0, %v1509
    %v1511 = vmul.f32 %v1508, %v1510
    %v1512 = vadd.f32 %v1508, %v1511
    %vm1513 = vweird.f32 %v1507
    %vm1514 = vweird.f32 %v1508
    %vm1515 = vmor %vm1513, %vm1514
    %v1516 = vsel %vm1515, %v1508, %v1512
    %v1517 = vand.u32 2147483647, %v1507
    %vm1518 = vcmp.eq.f32.partialorder %v1517, 8.507059e+37
    %v1519 = vand.u32 %v1507, 2147483648
    %v1520 = vor.u32 1.1754944e-38, %v1519
    %v1521 = vsel %vm1518, %v1520, %v1516
    %v1522 = vmul.f32 1.0, %v1521
    %v1523 = vtanh.pop %v1503
    %1525 = vrot.lane.b32.xlu0 %v1523, 32
    %v1526 = vpop.permute.xlu0 %1525
    %v1528 = vmul.f32 %v1522, %v1526
    %v1529 = vtanh.pop %v1528
    %1531 = vrot.lane.b32.xlu0 %v1529, 64
    %v1532 = vpop.permute.xlu0 %1531
    %v1534 = vmul.f32 %v1522, %v1532
    %v1535 = vpack.c.bf16 %v1534, %v1534
    %v1536 = vld [vmem:[#allocation2 + $0x8] sm:$0xff]
    %1538 = vrot.lane.b32.xlu0 %v1535, 64
    %v1539 = vpop.permute.xlu0 %1538
    %v1544 = vunpack.c.l.b16 %v1499
    %v1545 = vunpack.c.l.b16 %v1500
    %v1546 = vunpack.c.l.b16 %v1501
    %v1547 = vunpack.c.l.b16 %v1502
    %v1548 = vpack.c.b16 %v1545, %v1544
    %v1549 = vpack.c.b16 %v1547, %v1546
    %v1553 = vsel %vm346, %v1539, 0
    %1555 = vmatpush.bf16.msra.mxu0 0
    %1556 = vmatpush.bf16.msra.mxu0 0
    %1557 = vmatpush.bf16.msra.mxu0 0
    %1558 = vmatpush.bf16.msra.mxu0 0
    %1559 = vmatpush.bf16.msra.mxu0 0
    %1560 = vmatpush.bf16.msra.mxu0 0
    %1561 = vmatpush.bf16.msra.mxu0 %v1549
    %1562 = vmatpush.bf16.msra.mxu0 %v1548
    %1563 = vmatmul.bf16.gmra.mxu0 %v1553
    %v1564 = vpop.f32.mrf.mxu0
    %v1565 = vadd.f32 0.0, %v1564
    %v1566 = vpop.f32.mrf.mxu0
    %1567 = vdwg.mxu0
    %v1568 = vadd.f32 %v1536, %v1565
    %v1569 = vxor.u32 %v1568, 2147483648
    %v1570 = vmul.f32 %v1569, 1.442695
    %v1571 = vpow.pop %v1570
    %v1572 = vadd.f32 %v1571, 1.0
    %v1573 = vrcp.pop %v1572
    %v1574 = vmul.f32 %v1572, %v1573
    %v1575 = vsub.f32 1.0, %v1574
    %v1576 = vmul.f32 %v1573, %v1575
    %v1577 = vadd.f32 %v1573, %v1576
    %vm1578 = vweird.f32 %v1572
    %vm1579 = vweird.f32 %v1573
    %vm1580 = vmor %vm1578, %vm1579
    %v1581 = vsel %vm1580, %v1573, %v1577
    %v1582 = vand.u32 2147483647, %v1572
    %vm1583 = vcmp.eq.f32.partialorder %v1582, 8.507059e+37
    %v1584 = vand.u32 %v1572, 2147483648
    %v1585 = vor.u32 1.1754944e-38, %v1584
    %v1586 = vsel %vm1583, %v1585, %v1581
    %v1587 = vmul.f32 1.0, %v1586
    %v1588 = vtanh.pop %v1568
    %1590 = vrot.lane.b32.xlu0 %v1528, 32
    %v1591 = vpop.permute.xlu0 %1590
    %v1593 = vmul.f32 %v1587, %v1591
    %1595 = vrot.lane.b32.xlu0 %v1588, 32
    %v1596 = vpop.permute.xlu0 %1595
    %v1598 = vmul.f32 %v1587, %v1596
    %1600 = vrot.lane.b32.xlu0 %v1598, 32
    %v1601 = vpop.permute.xlu0 %1600
    %v1603 = vadd.f32 %v1593, %v1601
    %v1604 = vtanh.pop %v1603
    %1606 = vrot.lane.b32.xlu0 %v1604, 32
    %v1607 = vpop.permute.xlu0 %1606
    %v1609 = vmul.f32 %v1587, %v1607
    %v1610 = vpack.c.bf16 %v1609, %v1609
    %v1611 = vld [vmem:[#allocation2 + $0x10] sm:$0xff]
    %1613 = vrot.lane.b32.xlu0 %v1610, 64
    %v1614 = vpop.permute.xlu0 %1613
    %v1616 = vsel %vm346, %v1614, 0
    %1618 = vmatpush.bf16.msra.mxu0 0
    %1619 = vmatpush.bf16.msra.mxu0 0
    %1620 = vmatpush.bf16.msra.mxu0 0
    %1621 = vmatpush.bf16.msra.mxu0 0
    %1622 = vmatpush.bf16.msra.mxu0 0
    %1623 = vmatpush.bf16.msra.mxu0 0
    %1624 = vmatpush.bf16.msra.mxu0 %v1549
    %1625 = vmatpush.bf16.msra.mxu0 %v1548
    %1626 = vmatmul.bf16.gmra.mxu0 %v1616
    %v1627 = vpop.f32.mrf.mxu0
    %v1628 = vadd.f32 0.0, %v1627
    %v1629 = vpop.f32.mrf.mxu0
    %1630 = vdwg.mxu0
    %v1631 = vadd.f32 %v1611, %v1628
    %v1632 = vxor.u32 %v1631, 2147483648
    %v1633 = vmul.f32 %v1632, 1.442695
    %v1634 = vpow.pop %v1633
    %v1635 = vadd.f32 %v1634, 1.0
    %v1636 = vrcp.pop %v1635
    %v1637 = vmul.f32 %v1635, %v1636
    %v1638 = vsub.f32 1.0, %v1637
    %v1639 = vmul.f32 %v1636, %v1638
    %v1640 = vadd.f32 %v1636, %v1639
    %vm1641 = vweird.f32 %v1635
    %vm1642 = vweird.f32 %v1636
    %vm1643 = vmor %vm1641, %vm1642
    %v1644 = vsel %vm1643, %v1636, %v1640
    %v1645 = vand.u32 2147483647, %v1635
    %vm1646 = vcmp.eq.f32.partialorder %v1645, 8.507059e+37
    %v1647 = vand.u32 %v1635, 2147483648
    %v1648 = vor.u32 1.1754944e-38, %v1647
    %v1649 = vsel %vm1646, %v1648, %v1644
    %v1650 = vmul.f32 1.0, %v1649
    %v1651 = vtanh.pop %v1631
    %v1652 = vmul.f32 %v1650, %v1603
    %1654 = vrot.lane.b32.xlu0 %v1651, 32
    %v1655 = vpop.permute.xlu0 %1654
    %v1657 = vmul.f32 %v1650, %v1655
    %1659 = vrot.lane.b32.xlu0 %v1657, 32
    %v1660 = vpop.permute.xlu0 %1659
    %v1662 = vadd.f32 %v1652, %v1660
    %v1663 = vtanh.pop %v1662
    %1665 = vrot.lane.b32.xlu0 %v1663, 32
    %v1666 = vpop.permute.xlu0 %1665
    %v1668 = vmul.f32 %v1650, %v1666
    %v1669 = vpack.c.bf16 %v1668, %v1668
    %v1670 = vld [vmem:[#allocation2 + $0x18] sm:$0xff]
    %1672 = vrot.lane.b32.xlu0 %v1669, 64
    %v1673 = vpop.permute.xlu0 %1672
    %v1675 = vsel %vm346, %v1673, 0
    %1677 = vmatpush.bf16.msra.mxu0 0
    %1678 = vmatpush.bf16.msra.mxu0 0
    %1679 = vmatpush.bf16.msra.mxu0 0
    %1680 = vmatpush.bf16.msra.mxu0 0
    %1681 = vmatpush.bf16.msra.mxu0 0
    %1682 = vmatpush.bf16.msra.mxu0 0
    %1683 = vmatpush.bf16.msra.mxu0 %v1549
    %1684 = vmatpush.bf16.msra.mxu0 %v1548
    %1685 = vmatmul.bf16.gmra.mxu0 %v1675
    %v1686 = vpop.f32.mrf.mxu0
    %v1687 = vadd.f32 0.0, %v1686
    %v1688 = vpop.f32.mrf.mxu0
    %1689 = vdwg.mxu0
    %v1690 = vadd.f32 %v1670, %v1687
    %v1691 = vxor.u32 %v1690, 2147483648
    %v1692 = vmul.f32 %v1691, 1.442695
    %v1693 = vpow.pop %v1692
    %v1694 = vadd.f32 %v1693, 1.0
    %v1695 = vrcp.pop %v1694
    %v1696 = vmul.f32 %v1694, %v1695
    %v1697 = vsub.f32 1.0, %v1696
    %v1698 = vmul.f32 %v1695, %v1697
    %v1699 = vadd.f32 %v1695, %v1698
    %vm1700 = vweird.f32 %v1694
    %vm1701 = vweird.f32 %v1695
    %vm1702 = vmor %vm1700, %vm1701
    %v1703 = vsel %vm1702, %v1695, %v1699
    %v1704 = vand.u32 2147483647, %v1694
    %vm1705 = vcmp.eq.f32.partialorder %v1704, 8.507059e+37
    %v1706 = vand.u32 %v1694, 2147483648
    %v1707 = vor.u32 1.1754944e-38, %v1706
    %v1708 = vsel %vm1705, %v1707, %v1703
    %v1709 = vmul.f32 1.0, %v1708
    %v1710 = vtanh.pop %v1690
    %v1711 = vmul.f32 %v1709, %v1662
    %1713 = vrot.lane.b32.xlu0 %v1710, 32
    %v1714 = vpop.permute.xlu0 %1713
    %v1716 = vmul.f32 %v1709, %v1714
    %1718 = vrot.lane.b32.xlu0 %v1716, 32
    %v1719 = vpop.permute.xlu0 %1718
    %v1721 = vadd.f32 %v1711, %v1719
    %v1722 = vtanh.pop %v1721
    %1724 = vrot.lane.b32.xlu0 %v1722, 32
    %v1725 = vpop.permute.xlu0 %1724
    %v1727 = vmul.f32 %v1709, %v1725
    %v1728 = vpack.c.bf16 %v1727, %v1727
    %v1729 = vld [vmem:[#allocation2 + $0x20] sm:$0xff]
    %1731 = vrot.lane.b32.xlu0 %v1728, 64
    %v1732 = vpop.permute.xlu0 %1731
    %v1734 = vsel %vm346, %v1732, 0
    %1736 = vmatpush.bf16.msra.mxu0 0
    %1737 = vmatpush.bf16.msra.mxu0 0
    %1738 = vmatpush.bf16.msra.mxu0 0
    %1739 = vmatpush.bf16.msra.mxu0 0
    %1740 = vmatpush.bf16.msra.mxu0 0
    %1741 = vmatpush.bf16.msra.mxu0 0
    %1742 = vmatpush.bf16.msra.mxu0 %v1549
    %1743 = vmatpush.bf16.msra.mxu0 %v1548
    %1744 = vmatmul.bf16.gmra.mxu0 %v1734
    %v1745 = vpop.f32.mrf.mxu0
    %v1746 = vadd.f32 0.0, %v1745
    %v1747 = vpop.f32.mrf.mxu0
    %1748 = vdwg.mxu0
    %v1749 = vadd.f32 %v1729, %v1746
    %v1750 = vxor.u32 %v1749, 2147483648
    %v1751 = vmul.f32 %v1750, 1.442695
    %v1752 = vpow.pop %v1751
    %v1753 = vadd.f32 %v1752, 1.0
    %v1754 = vrcp.pop %v1753
    %v1755 = vmul.f32 %v1753, %v1754
    %v1756 = vsub.f32 1.0, %v1755
    %v1757 = vmul.f32 %v1754, %v1756
    %v1758 = vadd.f32 %v1754, %v1757
    %vm1759 = vweird.f32 %v1753
    %vm1760 = vweird.f32 %v1754
    %vm1761 = vmor %vm1759, %vm1760
    %v1762 = vsel %vm1761, %v1754, %v1758
    %v1763 = vand.u32 2147483647, %v1753
    %vm1764 = vcmp.eq.f32.partialorder %v1763, 8.507059e+37
    %v1765 = vand.u32 %v1753, 2147483648
    %v1766 = vor.u32 1.1754944e-38, %v1765
    %v1767 = vsel %vm1764, %v1766, %v1762
    %v1768 = vmul.f32 1.0, %v1767
    %v1769 = vtanh.pop %v1749
    %v1770 = vmul.f32 %v1768, %v1721
    %1772 = vrot.lane.b32.xlu0 %v1769, 32
    %v1773 = vpop.permute.xlu0 %1772
    %v1775 = vmul.f32 %v1768, %v1773
    %1777 = vrot.lane.b32.xlu0 %v1775, 32
    %v1778 = vpop.permute.xlu0 %1777
    %v1780 = vadd.f32 %v1770, %v1778
    %v1781 = vtanh.pop %v1780
    %1783 = vrot.lane.b32.xlu0 %v1781, 32
    %v1784 = vpop.permute.xlu0 %1783
    %v1786 = vmul.f32 %v1768, %v1784
    %v1787 = vpack.c.bf16 %v1786, %v1786
    %v1788 = vld [vmem:[#allocation2 + $0x28] sm:$0xff]
    %1790 = vrot.lane.b32.xlu0 %v1787, 64
    %v1791 = vpop.permute.xlu0 %1790
    %v1793 = vsel %vm346, %v1791, 0
    %1795 = vmatpush.bf16.msra.mxu0 0
    %1796 = vmatpush.bf16.msra.mxu0 0
    %1797 = vmatpush.bf16.msra.mxu0 0
    %1798 = vmatpush.bf16.msra.mxu0 0
    %1799 = vmatpush.bf16.msra.mxu0 0
    %1800 = vmatpush.bf16.msra.mxu0 0
    %1801 = vmatpush.bf16.msra.mxu0 %v1549
    %1802 = vmatpush.bf16.msra.mxu0 %v1548
    %1803 = vmatmul.bf16.gmra.mxu0 %v1793
    %v1804 = vpop.f32.mrf.mxu0
    %v1805 = vadd.f32 0.0, %v1804
    %v1806 = vpop.f32.mrf.mxu0
    %1807 = vdwg.mxu0
    %v1808 = vadd.f32 %v1788, %v1805
    %v1809 = vxor.u32 %v1808, 2147483648
    %v1810 = vmul.f32 %v1809, 1.442695
    %v1811 = vpow.pop %v1810
    %v1812 = vadd.f32 %v1811, 1.0
    %v1813 = vrcp.pop %v1812
    %v1814 = vmul.f32 %v1812, %v1813
    %v1815 = vsub.f32 1.0, %v1814
    %v1816 = vmul.f32 %v1813, %v1815
    %v1817 = vadd.f32 %v1813, %v1816
    %vm1818 = vweird.f32 %v1812
    %vm1819 = vweird.f32 %v1813
    %vm1820 = vmor %vm1818, %vm1819
    %v1821 = vsel %vm1820, %v1813, %v1817
    %v1822 = vand.u32 2147483647, %v1812
    %vm1823 = vcmp.eq.f32.partialorder %v1822, 8.507059e+37
    %v1824 = vand.u32 %v1812, 2147483648
    %v1825 = vor.u32 1.1754944e-38, %v1824
    %v1826 = vsel %vm1823, %v1825, %v1821
    %v1827 = vmul.f32 1.0, %v1826
    %v1828 = vtanh.pop %v1808
    %v1829 = vmul.f32 %v1827, %v1780
    %1831 = vrot.lane.b32.xlu0 %v1828, 32
    %v1832 = vpop.permute.xlu0 %1831
    %v1834 = vmul.f32 %v1827, %v1832
    %1836 = vrot.lane.b32.xlu0 %v1834, 32
    %v1837 = vpop.permute.xlu0 %1836
    %v1839 = vadd.f32 %v1829, %v1837
    %v1840 = vtanh.pop %v1839
    %1842 = vrot.lane.b32.xlu0 %v1840, 32
    %v1843 = vpop.permute.xlu0 %1842
    %v1845 = vmul.f32 %v1827, %v1843
    %v1846 = vpack.c.bf16 %v1845, %v1845
    %v1847 = vld [vmem:[#allocation2 + $0x30] sm:$0xff]
    %1849 = vrot.lane.b32.xlu0 %v1846, 64
    %v1850 = vpop.permute.xlu0 %1849
    %v1852 = vsel %vm346, %v1850, 0
    %1854 = vmatpush.bf16.msra.mxu0 0
    %1855 = vmatpush.bf16.msra.mxu0 0
    %1856 = vmatpush.bf16.msra.mxu0 0
    %1857 = vmatpush.bf16.msra.mxu0 0
    %1858 = vmatpush.bf16.msra.mxu0 0
    %1859 = vmatpush.bf16.msra.mxu0 0
    %1860 = vmatpush.bf16.msra.mxu0 %v1549
    %1861 = vmatpush.bf16.msra.mxu0 %v1548
    %1862 = vmatmul.bf16.gmra.mxu0 %v1852
    %v1863 = vpop.f32.mrf.mxu0
    %v1864 = vadd.f32 0.0, %v1863
    %v1865 = vpop.f32.mrf.mxu0
    %1866 = vdwg.mxu0
    %v1867 = vadd.f32 %v1847, %v1864
    %v1868 = vxor.u32 %v1867, 2147483648
    %v1869 = vmul.f32 %v1868, 1.442695
    %v1870 = vpow.pop %v1869
    %v1871 = vadd.f32 %v1870, 1.0
    %v1872 = vrcp.pop %v1871
    %v1873 = vmul.f32 %v1871, %v1872
    %v1874 = vsub.f32 1.0, %v1873
    %v1875 = vmul.f32 %v1872, %v1874
    %v1876 = vadd.f32 %v1872, %v1875
    %vm1877 = vweird.f32 %v1871
    %vm1878 = vweird.f32 %v1872
    %vm1879 = vmor %vm1877, %vm1878
    %v1880 = vsel %vm1879, %v1872, %v1876
    %v1881 = vand.u32 2147483647, %v1871
    %vm1882 = vcmp.eq.f32.partialorder %v1881, 8.507059e+37
    %v1883 = vand.u32 %v1871, 2147483648
    %v1884 = vor.u32 1.1754944e-38, %v1883
    %v1885 = vsel %vm1882, %v1884, %v1880
    %v1886 = vmul.f32 1.0, %v1885
    %v1887 = vtanh.pop %v1867
    %v1888 = vmul.f32 %v1886, %v1839
    %1890 = vrot.lane.b32.xlu0 %v1887, 32
    %v1891 = vpop.permute.xlu0 %1890
    %v1893 = vmul.f32 %v1886, %v1891
    %1895 = vrot.lane.b32.xlu0 %v1893, 32
    %v1896 = vpop.permute.xlu0 %1895
    %v1898 = vadd.f32 %v1888, %v1896
    %v1899 = vtanh.pop %v1898
    %1901 = vrot.lane.b32.xlu0 %v1899, 32
    %v1902 = vpop.permute.xlu0 %1901
    %v1904 = vmul.f32 %v1886, %v1902
    %v1905 = vpack.c.bf16 %v1904, %v1904
    %v1906 = vld [vmem:[#allocation2 + $0x38] sm:$0xff]
    %1908 = vrot.lane.b32.xlu0 %v1905, 64
    %v1909 = vpop.permute.xlu0 %1908
    %v1911 = vsel %vm346, %v1909, 0
    %1913 = vmatpush.bf16.msra.mxu0 0
    %1914 = vmatpush.bf16.msra.mxu0 0
    %1915 = vmatpush.bf16.msra.mxu0 0
    %1916 = vmatpush.bf16.msra.mxu0 0
    %1917 = vmatpush.bf16.msra.mxu0 0
    %1918 = vmatpush.bf16.msra.mxu0 0
    %1919 = vmatpush.bf16.msra.mxu0 %v1549
    %1920 = vmatpush.bf16.msra.mxu0 %v1548
    %1921 = vmatmul.bf16.gmra.mxu0 %v1911
    %v1922 = vpop.f32.mrf.mxu0
    %v1923 = vadd.f32 0.0, %v1922
    %v1924 = vpop.f32.mrf.mxu0
    %1925 = vdwg.mxu0
    %v1926 = vadd.f32 %v1906, %v1923
    %v1927 = vxor.u32 %v1926, 2147483648
    %v1928 = vmul.f32 %v1927, 1.442695
    %v1929 = vpow.pop %v1928
    %v1930 = vadd.f32 %v1929, 1.0
    %v1931 = vrcp.pop %v1930
    %v1932 = vmul.f32 %v1930, %v1931
    %v1933 = vsub.f32 1.0, %v1932
    %v1934 = vmul.f32 %v1931, %v1933
    %v1935 = vadd.f32 %v1931, %v1934
    %vm1936 = vweird.f32 %v1930
    %vm1937 = vweird.f32 %v1931
    %vm1938 = vmor %vm1936, %vm1937
    %v1939 = vsel %vm1938, %v1931, %v1935
    %v1940 = vand.u32 2147483647, %v1930
    %vm1941 = vcmp.eq.f32.partialorder %v1940, 8.507059e+37
    %v1942 = vand.u32 %v1930, 2147483648
    %v1943 = vor.u32 1.1754944e-38, %v1942
    %v1944 = vsel %vm1941, %v1943, %v1939
    %v1945 = vmul.f32 1.0, %v1944
    %v1946 = vtanh.pop %v1926
    %v1947 = vmul.f32 %v1945, %v1898
    %1949 = vrot.lane.b32.xlu0 %v1946, 32
    %v1950 = vpop.permute.xlu0 %1949
    %v1952 = vmul.f32 %v1945, %v1950
    %1954 = vrot.lane.b32.xlu0 %v1952, 32
    %v1955 = vpop.permute.xlu0 %1954
    %v1957 = vadd.f32 %v1947, %v1955
    %v1958 = vtanh.pop %v1957
    %1960 = vrot.lane.b32.xlu0 %v1958, 32
    %v1961 = vpop.permute.xlu0 %1960
    %v1963 = vmul.f32 %v1945, %v1961
    %v1964 = vld [vmem:[%s4] sm:$0xff]
    %v1965 = vld [vmem:[%s4 + $0x8] sm:$0xff]
    %v1966 = vld [vmem:[%s4 + $0x10] sm:$0xff]
    %v1967 = vld [vmem:[%s4 + $0x18] sm:$0xff]
    %v1968 = vld [vmem:[%s5] sm:$0x1]
    %v1970 = vperm.slane %v1968, 0
    %1973 = vrot.lane.b32.xlu0 %v1963, 64
    %v1974 = vpop.permute.xlu0 %1973
    %v1975 = vsel %vm346, %v1974, 0
    %1977 = vmatpush.msra.mxu0 0.0
    %1978 = vmatpush.msra.mxu0 0.0
    %1979 = vmatpush.msra.mxu0 0.0
    %1980 = vmatpush.msra.mxu0 0.0
    %1981 = vmatpush.msra.mxu0 0.0
    %1982 = vmatpush.msra.mxu0 0.0
    %1983 = vmatpush.msra.mxu0 0.0
    %1984 = vmatpush.msra.mxu0 0.0
    %1985 = vmatpush.msra.mxu0 0.0
    %1986 = vmatpush.msra.mxu0 0.0
    %1987 = vmatpush.msra.mxu0 0.0
    %1988 = vmatpush.msra.mxu0 0.0
    %1989 = vmatpush.msra.mxu0 %v1967
    %1990 = vmatpush.msra.mxu0 %v1966
    %1991 = vmatpush.msra.mxu0 %v1965
    %1992 = vmatpush.msra.mxu0 %v1964
    %1993 = vmatmul.f32.gmra.mxu0 %v1975
    %v1994 = vpop.f32.mrf.mxu0
    %v1995 = vadd.f32 %v1970, %v1994
    %1996 = vdwg.mxu0
    %vm1997 = vcmask 58368
    %1998 = vst.msk [vmem:[#allocation7] sm:$0x3] %vm1997, %v1995
    // Predicated region
    $region30: #{tpu_custom_call.1} parent=1 // pred_check
      _
    $region31: #{tpu_custom_call.1} parent=1 // pred_check_branch
      %2000 = sbr.rel (0) target = $region33
    $region32: #{tpu_custom_call.1} parent=1 // pred_region
      %2002 = vsyncadd [#allocation6], 0
      %s2004 = sshll.u32 [#allocation7], 4
      %s2005 = int_to_ptr.vmem [resolvable:$true] %s2004
      %s2006 = sshll.u32 %s6, 4
      %s2007 = int_to_ptr.hbm [resolvable:$true] %s2006
      %2009 = dma.vmem_to_hbm [thread:$0]  %s2005, 32, %s2007, [#allocation6]
    $region33: #{tpu_custom_call.1} parent=1 // pred_fallthru
      _
    // Predicated region
    $region34: #{tpu_custom_call.1} parent=1 // pred_check
      _
    $region35: #{tpu_custom_call.1} parent=1 // pred_check_branch
      %2011 = sbr.rel (0) target = $region37
    $region36: #{tpu_custom_call.1} parent=1 // pred_region
      %2013 = dma.done [#allocation6], 32
    $region37: #{tpu_custom_call.1} parent=1 // pred_fallthru
      _
    %2014 = vsyncpa [#allocation5], 1
    %2015 = vsyncpa [#allocation6], 1

</llo_original>
